<compile_context>
chip_gen: v5e
topology: v5e:2x2
jax: 0.10.0
libtpu: 0.0.40
codegen_flags: <defaults>
</compile_context>

<pallas_src>
import functools

import jax
import jax.numpy as jnp
from jax.experimental import pallas as pl
from jax.experimental.pallas import tpu as pltpu

HIDDEN = 64                 # LSTM hidden size
LSTM_OUT = 2 * HIDDEN       # 128 = bidirectional output width
GATES = 6 * HIDDEN          # 384 = [i_f | i_b | o_f | o_b | g_f | g_b]
NEG_BIG = -1e30             # bias on padded class columns -> softmax prob exactly 0


def _round_up(x, m):
    return (x + m - 1) // m * m


# --------------------------------------------------------------------------- kernel
def make_classifier_kernel(layer_units, nc_pad, num_classes):
    num_fc = len(layer_units)

    def kernel(x_ref, w_lstm_ref, vecs_ref, *rest):
        # rest = (W_fc_0, ..., W_fc_{L-1}, W_out, out_ref)
        fc_w_refs = rest[:num_fc]
        wo_ref = rest[num_fc]
        out_ref = rest[num_fc + 1]

        # ---- BiLSTM (seq_len=1, zero state) as one fused input projection --------
        x = x_ref[...].astype(jnp.bfloat16)              # f32 HBM tile -> bf16 here
        b_lstm = vecs_ref[0:1, 0:GATES]                  # (1, 384) f32
        gates = jnp.dot(x, w_lstm_ref[...],
                        preferred_element_type=jnp.float32) + b_lstm
        i = jax.nn.sigmoid(gates[:, 0:LSTM_OUT])                  # (TB,128)
        o = jax.nn.sigmoid(gates[:, LSTM_OUT:2 * LSTM_OUT])       # (TB,128)
        g = jnp.tanh(gates[:, 2 * LSTM_OUT:3 * LSTM_OUT])         # (TB,128)
        y = o * jnp.tanh(i * g)                          # (TB, 128) = [h_fwd | h_bwd]

        # ---- FC stack: Linear -> LeakyReLU(0.2) -> LayerNorm(normalize only) -----
        # (gamma/beta of each LayerNorm and Dropout(eval) are folded into the NEXT
        #  matmul's weights/bias at pack time, so only the normalization runs here.)
        for l in range(num_fc):
            units = layer_units[l]
            b = vecs_ref[1 + l:2 + l, 0:units]           # (1, units) f32
            y = jnp.dot(y.astype(jnp.bfloat16), fc_w_refs[l][...],
                        preferred_element_type=jnp.float32) + b
            y = jnp.maximum(y, 0.2 * y)                  # LeakyReLU(0.2): mul+max
            inv_n = 1.0 / units
            mean = jnp.sum(y, axis=-1, keepdims=True) * inv_n
            meansq = jnp.sum(y * y, axis=-1, keepdims=True) * inv_n
            var = meansq - mean * mean                   # single-pass statistics
            y = (y - mean) * jax.lax.rsqrt(var + 1e-5)

        # ---- Output layer + softmax over the lane-padded class axis --------------
        bo = vecs_ref[1 + num_fc:2 + num_fc, 0:nc_pad]   # padded columns = -1e30
        logits = jnp.dot(y.astype(jnp.bfloat16), wo_ref[...],
                         preferred_element_type=jnp.float32) + bo
        m = jnp.max(logits, axis=-1, keepdims=True)
        e = jnp.exp(logits - m)
        denom = jnp.sum(e, axis=-1, keepdims=True)
        probs = e * pl.reciprocal(denom, approx=True)
        out_ref[...] = probs[:, 0:num_classes]           # narrow f32 store (16 B/row)

    return kernel


# --------------------------------------------------------------------------- wrapper
@functools.partial(jax.jit, static_argnames=("layer_units", "num_classes"))
def classifier_forward(x, packed, layer_units, num_classes):
    B, D = x.shape
    nc_pad = packed["wo"].shape[1]

    # Adaptive batch tile: large tiles amortize per-step overhead; keep >=4 grid
    # steps when possible so v7x's two TensorCores both get work; cap at 512 so the
    # double-buffered tiles + f32 intermediates fit v5e's 16 MiB scoped VMEM default.
    tb = min(512, _round_up(max(pl.cdiv(B, 4), 8), 16))
    grid_b = pl.cdiv(B, tb)
    padded_b = grid_b * tb

    const = lambda i: (0, 0)   # weights: same block every step -> VMEM-resident

    args = [x, packed["w_lstm"], packed["vecs"]] + list(packed["fc_w"]) + [packed["wo"]]
    in_specs = ([pl.BlockSpec((tb, D), lambda i: (i, 0))]     # partial last tile OK
                + [pl.BlockSpec(a.shape, const) for a in args[1:]])
    out_specs = pl.BlockSpec((tb, num_classes), lambda i: (i, 0))

    # Advisory cost estimate for XLA's scheduler.
    flops_row = 2 * D * GATES
    in_dim = LSTM_OUT
    for u in layer_units:
        flops_row += 2 * in_dim * u
        in_dim = u
    flops_row += 2 * in_dim * nc_pad
    bytes_accessed = (int(x.size) * x.dtype.itemsize
                      + padded_b * num_classes * 4
                      + sum(int(a.size) * a.dtype.itemsize for a in args[1:]))
    cost = pl.CostEstimate(
        flops=int(padded_b * flops_row),
        transcendentals=int(padded_b * (4 * LSTM_OUT + len(layer_units) + nc_pad + 1)),
        bytes_accessed=int(bytes_accessed),
    )

    kernel = make_classifier_kernel(tuple(layer_units), nc_pad, num_classes)
    out = pl.pallas_call(
        kernel,
        out_shape=jax.ShapeDtypeStruct((padded_b, num_classes), jnp.float32),
        grid_spec=pltpu.PrefetchScalarGridSpec(
            num_scalar_prefetch=0,
            grid=(grid_b,),
            in_specs=in_specs,
            out_specs=out_specs,
        ),
        compiler_params=pltpu.CompilerParams(dimension_semantics=("parallel",)),
        cost_estimate=cost,
    )(*args)
    return out[:B]


# ------------------------------------------------------------------- parameter plumbing
def init_raw_params(key, output_dim, layer_units, num_classes):
    """PyTorch-layout parameters (nn.LSTM / nn.Linear / nn.LayerNorm state-dict shapes).
    weight_hh_l0* are omitted: with seq_len == 1 and zero initial state they never
    contribute to the forward pass."""
    scale = 0.1
    keys = iter(jax.random.split(key, 8 + 2 * len(layer_units) + 2))
    raw = {
        "w_ih_f": scale * jax.random.normal(next(keys), (4 * HIDDEN, output_dim), jnp.float32),
        "b_ih_f": scale * jax.random.normal(next(keys), (4 * HIDDEN,), jnp.float32),
        "b_hh_f": scale * jax.random.normal(next(keys), (4 * HIDDEN,), jnp.float32),
        "w_ih_b": scale * jax.random.normal(next(keys), (4 * HIDDEN, output_dim), jnp.float32),
        "b_ih_b": scale * jax.random.normal(next(keys), (4 * HIDDEN,), jnp.float32),
        "b_hh_b": scale * jax.random.normal(next(keys), (4 * HIDDEN,), jnp.float32),
    }
    fc = []
    in_dim = LSTM_OUT
    for units in layer_units:
        w = scale * jax.random.normal(next(keys), (units, in_dim), jnp.float32)
        b = scale * jax.random.normal(next(keys), (units,), jnp.float32)
        fc.append((w, b, jnp.ones((units,), jnp.float32), jnp.zeros((units,), jnp.float32)))
        in_dim = units
    raw["fc"] = fc
    raw["wo"] = scale * jax.random.normal(next(keys), (num_classes, in_dim), jnp.float32)
    raw["bo"] = scale * jax.random.normal(next(keys), (num_classes,), jnp.float32)
    return raw


def pack_params(raw, num_classes):
    """Repack PyTorch-layout params into the kernel's fused, lane-aligned, bf16 layout.
    Each LayerNorm's (gamma, beta) affine is folded into the FOLLOWING Linear at pack
    time (exact in eval mode, since Dropout is identity):
        y*gamma + beta followed by @W^T + b  ==  y @ (diag(gamma) W^T) + (beta @ W^T + b)."""
    H = HIDDEN
    nc_pad = _round_up(max(num_classes, 1), 128)

    def split_gates(w_ih, b_ih, b_hh):
        # PyTorch gate order along rows: [i | f | g | o]; forget gate is dead.
        w_t = w_ih.T                                   # (D, 4H), columns [i|f|g|o]
        b = b_ih + b_hh
        return (w_t[:, 0:H], w_t[:, 2 * H:3 * H], w_t[:, 3 * H:4 * H],
                b[0:H], b[2 * H:3 * H], b[3 * H:4 * H])

    wi_f, wg_f, wo_f, bi_f, bg_f, bo_f = split_gates(raw["w_ih_f"], raw["b_ih_f"], raw["b_hh_f"])
    wi_b, wg_b, wo_b, bi_b, bg_b, bo_b = split_gates(raw["w_ih_b"], raw["b_ih_b"], raw["b_hh_b"])
    w_lstm = jnp.concatenate([wi_f, wi_b, wo_f, wo_b, wg_f, wg_b], axis=1)   # (D, 384)
    b_lstm = jnp.concatenate([bi_f, bi_b, bo_f, bo_b, bg_f, bg_b])           # (384,)

    # FC weights with the PREVIOUS layer's LayerNorm affine folded in.
    fc_w, fc_b = [], []
    prev_gamma = prev_beta = None
    for (w, b, gamma, beta) in raw["fc"]:
        wt = w.T                                        # (in_dim, units), f32
        bias = b
        if prev_gamma is not None:
            bias = bias + prev_beta @ wt
            wt = prev_gamma[:, None] * wt
        fc_w.append(wt.astype(jnp.bfloat16))
        fc_b.append(bias)
        prev_gamma, prev_beta = gamma, beta

    wo_t = raw["wo"].T                                  # (in_dim, num_classes)
    bo = raw["bo"]
    if prev_gamma is not None:
        bo = bo + prev_beta @ wo_t
        wo_t = prev_gamma[:, None] * wo_t
    wo = jnp.zeros((wo_t.shape[0], nc_pad), jnp.float32)
    wo = wo.at[:, :num_classes].set(wo_t).astype(jnp.bfloat16)
    bo_pad = jnp.full((nc_pad,), NEG_BIG, jnp.float32).at[:num_classes].set(bo)

    vec_list = [b_lstm] + fc_b + [bo_pad]
    padw = _round_up(max(v.shape[0] for v in vec_list), 128)
    vecs = jnp.zeros((len(vec_list), padw), jnp.float32)
    for r, v in enumerate(vec_list):
        vecs = vecs.at[r, :v.shape[0]].set(v)

    return {"w_lstm": w_lstm.astype(jnp.bfloat16), "vecs": vecs, "fc_w": fc_w, "wo": wo}


# ------------------------------------------------------------------- pure-JAX reference
def reference_forward(x, raw):
    def cell(x, w_ih, b_ih, b_hh):
        gates = x @ w_ih.T + b_ih + b_hh
        i, f, g, o = jnp.split(gates, 4, axis=-1)
        c = jax.nn.sigmoid(i) * jnp.tanh(g)            # f * c0 == 0
        return jax.nn.sigmoid(o) * jnp.tanh(c)

    h_f = cell(x, raw["w_ih_f"], raw["b_ih_f"], raw["b_hh_f"])
    h_b = cell(x, raw["w_ih_b"], raw["b_ih_b"], raw["b_hh_b"])
    y = jnp.concatenate([h_f, h_b], axis=-1)
    for (w, b, gamma, beta) in raw["fc"]:
        y = y @ w.T + b
        y = jnp.where(y >= 0, y, 0.2 * y)
        mean = y.mean(-1, keepdims=True)
        var = ((y - mean) ** 2).mean(-1, keepdims=True)
        y = (y - mean) / jnp.sqrt(var + 1e-5) * gamma + beta
    logits = y @ raw["wo"].T + raw["bo"]
    return jax.nn.softmax(logits, axis=-1)


# --------------------------------------------------------------------------- demo
if __name__ == "__main__":
    batch = 200                       # not a multiple of the tile -> exercises the partial tile
    output_dim = 32                   # config.output_dim (LSTM input_size)
    discriminator_layers = (128, 64)  # config.discriminator_layers
    num_classes = 4

    key = jax.random.PRNGKey(0)
    k_x, k_p = jax.random.split(key)
    x = jax.random.normal(k_x, (batch, output_dim), jnp.float32)
    raw = init_raw_params(k_p, output_dim, discriminator_layers, num_classes)
    packed = pack_params(raw, num_classes)

    probs = classifier_forward(x, packed,
                               layer_units=discriminator_layers,
                               num_classes=num_classes)
    probs = jax.block_until_ready(probs)

    assert probs.shape == (batch, num_classes)
    row_sums = jnp.sum(probs, axis=1)
    assert bool(jnp.all(jnp.abs(row_sums - 1.0) < 1e-2)), "softmax rows do not sum to 1"

    ref = reference_forward(x, raw)
    max_err = float(jnp.max(jnp.abs(probs - ref)))
    assert max_err < 2e-2, f"mismatch vs pure-JAX reference: {max_err}"
    print("KERNEL_OK")
</pallas_src>

<mosaic_0001>
module attributes {stable_mosaic.version = 11 : i64} {
  func.func @kernel(%arg0: i32, %arg1: memref<64x32xf32, #tpu.memory_space<vmem>>, %arg2: memref<32x384xbf16, #tpu.memory_space<vmem>>, %arg3: memref<4x384xf32, #tpu.memory_space<vmem>>, %arg4: memref<128x128xbf16, #tpu.memory_space<vmem>>, %arg5: memref<128x64xbf16, #tpu.memory_space<vmem>>, %arg6: memref<64x128xbf16, #tpu.memory_space<vmem>>, %arg7: memref<64x4xf32, #tpu.memory_space<vmem>>) attributes {dimension_semantics = [#tpu.dimension_semantics<parallel>], iteration_bounds = array<i64: 4>, scalar_prefetch = 0 : i64, scratch_operands = 0 : i64, tpu.core_type = #tpu.core_type<tc>, window_params = [{transform_indices = @transform_0, window_bounds = array<i64: 64, 32>}, {pipeline_mode = #tpu.pipeline_mode<synchronous>, transform_indices = @transform_1, window_bounds = array<i64: 32, 384>}, {pipeline_mode = #tpu.pipeline_mode<synchronous>, transform_indices = @transform_2, window_bounds = array<i64: 4, 384>}, {pipeline_mode = #tpu.pipeline_mode<synchronous>, transform_indices = @transform_3, window_bounds = array<i64: 128, 128>}, {pipeline_mode = #tpu.pipeline_mode<synchronous>, transform_indices = @transform_4, window_bounds = array<i64: 128, 64>}, {pipeline_mode = #tpu.pipeline_mode<synchronous>, transform_indices = @transform_5, window_bounds = array<i64: 64, 128>}, {transform_indices = @transform_6, window_bounds = array<i64: 64, 4>}]} {
    %c0 = arith.constant 0 : index
    %c0_0 = arith.constant 0 : index
    %0 = vector.load %arg1[%c0, %c0_0] : memref<64x32xf32, #tpu.memory_space<vmem>>, vector<64x32xf32>
    %1 = arith.truncf %0 : vector<64x32xf32> to vector<64x32xbf16>
    %c0_1 = arith.constant 0 : index
    %c0_2 = arith.constant 0 : index
    %2 = vector.load %arg3[%c0_1, %c0_2] : memref<4x384xf32, #tpu.memory_space<vmem>>, vector<1x384xf32>
    %c0_3 = arith.constant 0 : index
    %c0_4 = arith.constant 0 : index
    %3 = vector.load %arg2[%c0_3, %c0_4] : memref<32x384xbf16, #tpu.memory_space<vmem>>, vector<32x384xbf16>
    %cst = arith.constant dense<0.000000e+00> : vector<64x384xf32>
    %4 = tpu.matmul %1, %3, %cst {dimension_numbers = #tpu.dot_dimension_numbers<[1], [0], [0], [1], [0, 0, 1, 1], [], []>} : vector<64x32xbf16>, vector<32x384xbf16>, vector<64x384xf32> -> vector<64x384xf32>
    %5 = vector.broadcast %2 : vector<1x384xf32> to vector<64x384xf32>
    %6 = arith.addf %4, %5 : vector<64x384xf32>
    %7 = vector.extract_strided_slice %6 {offsets = [0, 0], sizes = [64, 128], strides = [1, 1]} : vector<64x384xf32> to vector<64x128xf32>
    %8 = arith.negf %7 : vector<64x128xf32>
    %9 = math.exp %8 : vector<64x128xf32>
    %cst_5 = arith.constant 1.000000e+00 : f32
    %10 = vector.broadcast %cst_5 : f32 to vector<64x128xf32>
    %11 = arith.addf %10, %9 : vector<64x128xf32>
    %12 = arith.divf %10, %11 : vector<64x128xf32>
    %13 = vector.extract_strided_slice %6 {offsets = [0, 128], sizes = [64, 128], strides = [1, 1]} : vector<64x384xf32> to vector<64x128xf32>
    %14 = arith.negf %13 : vector<64x128xf32>
    %15 = math.exp %14 : vector<64x128xf32>
    %cst_6 = arith.constant 1.000000e+00 : f32
    %16 = vector.broadcast %cst_6 : f32 to vector<64x128xf32>
    %17 = arith.addf %16, %15 : vector<64x128xf32>
    %18 = arith.divf %16, %17 : vector<64x128xf32>
    %19 = vector.extract_strided_slice %6 {offsets = [0, 256], sizes = [64, 128], strides = [1, 1]} : vector<64x384xf32> to vector<64x128xf32>
    %20 = math.tanh %19 : vector<64x128xf32>
    %21 = arith.mulf %12, %20 : vector<64x128xf32>
    %22 = math.tanh %21 : vector<64x128xf32>
    %23 = arith.mulf %18, %22 : vector<64x128xf32>
    %c1 = arith.constant 1 : index
    %c0_7 = arith.constant 0 : index
    %24 = vector.load %arg3[%c1, %c0_7] : memref<4x384xf32, #tpu.memory_space<vmem>>, vector<1x128xf32>
    %25 = arith.truncf %23 : vector<64x128xf32> to vector<64x128xbf16>
    %c0_8 = arith.constant 0 : index
    %c0_9 = arith.constant 0 : index
    %26 = vector.load %arg4[%c0_8, %c0_9] : memref<128x128xbf16, #tpu.memory_space<vmem>>, vector<128x128xbf16>
    %cst_10 = arith.constant dense<0.000000e+00> : vector<64x128xf32>
    %27 = tpu.matmul %25, %26, %cst_10 {dimension_numbers = #tpu.dot_dimension_numbers<[1], [0], [0], [1], [0, 0, 1, 1], [], []>} : vector<64x128xbf16>, vector<128x128xbf16>, vector<64x128xf32> -> vector<64x128xf32>
    %28 = vector.broadcast %24 : vector<1x128xf32> to vector<64x128xf32>
    %29 = arith.addf %27, %28 : vector<64x128xf32>
    %cst_11 = arith.constant 2.000000e-01 : f32
    %30 = vector.broadcast %cst_11 : f32 to vector<64x128xf32>
    %31 = arith.mulf %30, %29 : vector<64x128xf32>
    %32 = arith.maximumf %29, %31 : vector<64x128xf32>
    %cst_12 = arith.constant dense<0.000000e+00> : vector<64xf32>
    %33 = vector.multi_reduction <add>, %32, %cst_12 [1] : vector<64x128xf32> to vector<64xf32>
    %34 = vector.shape_cast %33 : vector<64xf32> to vector<64x1xf32>
    %cst_13 = arith.constant 7.812500e-03 : f32
    %35 = vector.broadcast %cst_13 : f32 to vector<64x1xf32>
    %36 = arith.mulf %34, %35 : vector<64x1xf32>
    %37 = arith.mulf %32, %32 : vector<64x128xf32>
    %cst_14 = arith.constant dense<0.000000e+00> : vector<64xf32>
    %38 = vector.multi_reduction <add>, %37, %cst_14 [1] : vector<64x128xf32> to vector<64xf32>
    %39 = vector.shape_cast %38 : vector<64xf32> to vector<64x1xf32>
    %cst_15 = arith.constant 7.812500e-03 : f32
    %40 = vector.broadcast %cst_15 : f32 to vector<64x1xf32>
    %41 = arith.mulf %39, %40 : vector<64x1xf32>
    %42 = arith.mulf %36, %36 : vector<64x1xf32>
    %43 = arith.subf %41, %42 : vector<64x1xf32>
    %44 = vector.broadcast %36 : vector<64x1xf32> to vector<64x128xf32>
    %45 = arith.subf %32, %44 : vector<64x128xf32>
    %cst_16 = arith.constant 9.99999974E-6 : f32
    %46 = vector.broadcast %cst_16 : f32 to vector<64x1xf32>
    %47 = arith.addf %43, %46 : vector<64x1xf32>
    %48 = math.rsqrt %47 : vector<64x1xf32>
    %49 = vector.broadcast %48 : vector<64x1xf32> to vector<64x128xf32>
    %50 = arith.mulf %45, %49 : vector<64x128xf32>
    %c2 = arith.constant 2 : index
    %c0_17 = arith.constant 0 : index
    %51 = vector.load %arg3[%c2, %c0_17] : memref<4x384xf32, #tpu.memory_space<vmem>>, vector<1x64xf32>
    %52 = arith.truncf %50 : vector<64x128xf32> to vector<64x128xbf16>
    %c0_18 = arith.constant 0 : index
    %c0_19 = arith.constant 0 : index
    %53 = vector.load %arg5[%c0_18, %c0_19] : memref<128x64xbf16, #tpu.memory_space<vmem>>, vector<128x64xbf16>
    %cst_20 = arith.constant dense<0.000000e+00> : vector<64x64xf32>
    %54 = tpu.matmul %52, %53, %cst_20 {dimension_numbers = #tpu.dot_dimension_numbers<[1], [0], [0], [1], [0, 0, 1, 1], [], []>} : vector<64x128xbf16>, vector<128x64xbf16>, vector<64x64xf32> -> vector<64x64xf32>
    %55 = vector.broadcast %51 : vector<1x64xf32> to vector<64x64xf32>
    %56 = arith.addf %54, %55 : vector<64x64xf32>
    %cst_21 = arith.constant 2.000000e-01 : f32
    %57 = vector.broadcast %cst_21 : f32 to vector<64x64xf32>
    %58 = arith.mulf %57, %56 : vector<64x64xf32>
    %59 = arith.maximumf %56, %58 : vector<64x64xf32>
    %cst_22 = arith.constant dense<0.000000e+00> : vector<64xf32>
    %60 = vector.multi_reduction <add>, %59, %cst_22 [1] : vector<64x64xf32> to vector<64xf32>
    %61 = vector.shape_cast %60 : vector<64xf32> to vector<64x1xf32>
    %cst_23 = arith.constant 1.562500e-02 : f32
    %62 = vector.broadcast %cst_23 : f32 to vector<64x1xf32>
    %63 = arith.mulf %61, %62 : vector<64x1xf32>
    %64 = arith.mulf %59, %59 : vector<64x64xf32>
    %cst_24 = arith.constant dense<0.000000e+00> : vector<64xf32>
    %65 = vector.multi_reduction <add>, %64, %cst_24 [1] : vector<64x64xf32> to vector<64xf32>
    %66 = vector.shape_cast %65 : vector<64xf32> to vector<64x1xf32>
    %cst_25 = arith.constant 1.562500e-02 : f32
    %67 = vector.broadcast %cst_25 : f32 to vector<64x1xf32>
    %68 = arith.mulf %66, %67 : vector<64x1xf32>
    %69 = arith.mulf %63, %63 : vector<64x1xf32>
    %70 = arith.subf %68, %69 : vector<64x1xf32>
    %71 = vector.broadcast %63 : vector<64x1xf32> to vector<64x64xf32>
    %72 = arith.subf %59, %71 : vector<64x64xf32>
    %cst_26 = arith.constant 9.99999974E-6 : f32
    %73 = vector.broadcast %cst_26 : f32 to vector<64x1xf32>
    %74 = arith.addf %70, %73 : vector<64x1xf32>
    %75 = math.rsqrt %74 : vector<64x1xf32>
    %76 = vector.broadcast %75 : vector<64x1xf32> to vector<64x64xf32>
    %77 = arith.mulf %72, %76 : vector<64x64xf32>
    %c3 = arith.constant 3 : index
    %c0_27 = arith.constant 0 : index
    %78 = vector.load %arg3[%c3, %c0_27] : memref<4x384xf32, #tpu.memory_space<vmem>>, vector<1x128xf32>
    %79 = arith.truncf %77 : vector<64x64xf32> to vector<64x64xbf16>
    %c0_28 = arith.constant 0 : index
    %c0_29 = arith.constant 0 : index
    %80 = vector.load %arg6[%c0_28, %c0_29] : memref<64x128xbf16, #tpu.memory_space<vmem>>, vector<64x128xbf16>
    %cst_30 = arith.constant dense<0.000000e+00> : vector<64x128xf32>
    %81 = tpu.matmul %79, %80, %cst_30 {dimension_numbers = #tpu.dot_dimension_numbers<[1], [0], [0], [1], [0, 0, 1, 1], [], []>} : vector<64x64xbf16>, vector<64x128xbf16>, vector<64x128xf32> -> vector<64x128xf32>
    %82 = vector.broadcast %78 : vector<1x128xf32> to vector<64x128xf32>
    %83 = arith.addf %81, %82 : vector<64x128xf32>
    %cst_31 = arith.constant dense<0xFF800000> : vector<64xf32>
    %84 = vector.multi_reduction <maximumf>, %83, %cst_31 [1] : vector<64x128xf32> to vector<64xf32>
    %85 = vector.shape_cast %84 : vector<64xf32> to vector<64x1xf32>
    %86 = vector.broadcast %85 : vector<64x1xf32> to vector<64x128xf32>
    %87 = arith.subf %83, %86 : vector<64x128xf32>
    %88 = math.exp %87 : vector<64x128xf32>
    %cst_32 = arith.constant dense<0.000000e+00> : vector<64xf32>
    %89 = vector.multi_reduction <add>, %88, %cst_32 [1] : vector<64x128xf32> to vector<64xf32>
    %90 = vector.shape_cast %89 : vector<64xf32> to vector<64x1xf32>
    %91 = tpu.reciprocal %90 {approx = true} : vector<64x1xf32> -> vector<64x1xf32>
    %92 = vector.broadcast %91 : vector<64x1xf32> to vector<64x128xf32>
    %93 = arith.mulf %88, %92 : vector<64x128xf32>
    %94 = vector.extract_strided_slice %93 {offsets = [0, 0], sizes = [64, 4], strides = [1, 1]} : vector<64x128xf32> to vector<64x4xf32>
    %c0_33 = arith.constant 0 : index
    %c0_34 = arith.constant 0 : index
    %95 = vector.load %arg7[%c0_33, %c0_34] : memref<64x4xf32, #tpu.memory_space<vmem>>, vector<64x4xf32>
    tpu.vector_store %arg7[%c0_33, %c0_34], %94 {strides = array<i32>} : memref<64x4xf32, #tpu.memory_space<vmem>>, vector<64x4xf32>,
    return
  }
  func.func @transform_0(%arg0: i32) -> (i32, i32) {
    %c0_i32 = arith.constant 0 : i32
    %c0_i32_0 = arith.constant 0 : i32
    return %arg0, %c0_i32 : i32, i32
  }
  func.func @transform_1(%arg0: i32) -> (i32, i32) {
    %c0_i32 = arith.constant 0 : i32
    %c0_i32_0 = arith.constant 0 : i32
    %c0_i32_1 = arith.constant 0 : i32
    return %c0_i32, %c0_i32_0 : i32, i32
  }
  func.func @transform_2(%arg0: i32) -> (i32, i32) {
    %c0_i32 = arith.constant 0 : i32
    %c0_i32_0 = arith.constant 0 : i32
    %c0_i32_1 = arith.constant 0 : i32
    return %c0_i32, %c0_i32_0 : i32, i32
  }
  func.func @transform_3(%arg0: i32) -> (i32, i32) {
    %c0_i32 = arith.constant 0 : i32
    %c0_i32_0 = arith.constant 0 : i32
    %c0_i32_1 = arith.constant 0 : i32
    return %c0_i32, %c0_i32_0 : i32, i32
  }
  func.func @transform_4(%arg0: i32) -> (i32, i32) {
    %c0_i32 = arith.constant 0 : i32
    %c0_i32_0 = arith.constant 0 : i32
    %c0_i32_1 = arith.constant 0 : i32
    return %c0_i32, %c0_i32_0 : i32, i32
  }
  func.func @transform_5(%arg0: i32) -> (i32, i32) {
    %c0_i32 = arith.constant 0 : i32
    %c0_i32_0 = arith.constant 0 : i32
    %c0_i32_1 = arith.constant 0 : i32
    return %c0_i32, %c0_i32_0 : i32, i32
  }
  func.func @transform_6(%arg0: i32) -> (i32, i32) {
    %c0_i32 = arith.constant 0 : i32
    %c0_i32_0 = arith.constant 0 : i32
    return %arg0, %c0_i32 : i32, i32
  }
}

</mosaic_0001>

<llo_original>
// kernel: classifier_forward.1
$region0: #{classifier_forward.1}
  #allocation0 [shape = 'u32[]', space=smem, size = 0x4, offset = 0x4, fixed_abs, tag = 'smem constant byte address 0x4 - core index']
  #allocation1 [shape = 'u32[72,128]{1,0:T(1,128)}', space=vmem, size = 0x9000, scoped, tag = 'internal scratch']
  %s0 = inlined_call_operand.vmem [shape: f32[200,32], index: 0, kind: input, shape index: {}]
  %s1 = inlined_call_operand.vmem [shape: bf16[32,384], index: 1, kind: input, shape index: {}]
  %s2 = inlined_call_operand.vmem [shape: f32[4,384], index: 2, kind: input, shape index: {}]
  %s3 = inlined_call_operand.vmem [shape: bf16[128,128], index: 3, kind: input, shape index: {}]
  %s4 = inlined_call_operand.vmem [shape: bf16[128,64], index: 4, kind: input, shape index: {}]
  %s5 = inlined_call_operand.vmem [shape: bf16[64,128], index: 5, kind: input, shape index: {}]
  %s6 = inlined_call_operand.vmem [shape: f32[256,4], index: 6, kind: output, shape index: {}]
  %s7 = sld [smem:[#allocation0]]
  $region57: #{classifier_forward.1} parent=0
    _
  %s9 = ssub.s32 1, %s7
  %s10 = scalar_select 0, %s9, %s7
  loop: start=0, step=1, limit=6
  $region2: #{classifier_forward.1} parent=0 // loop_pre_header
    _
  $region3: #{classifier_forward.1} parent=0 // loop_header
    %s12 = sphi 0, %s16
    %p13 = scmp.ge.s32.totalorder %s12, 6
    %s22 = sphi 0, %s24
    %s25 = sphi 0, %s22
    %s26 = sphi 0, %s25
    %s42 = sphi 0, %s26
    %s46 = sphi 0, %s46
    %s48 = sphi 0, %s46
    %s49 = sphi 0, %s48
    %s63 = sphi 0, %s49
    %s67 = sphi 0, %s67
    %s69 = sphi 0, %s67
    %s70 = sphi 0, %s69
    %s84 = sphi 0, %s70
    %s88 = sphi 0, %s88
    %s90 = sphi 0, %s88
    %s91 = sphi 0, %s90
    %s105 = sphi 0, %s91
    %s109 = sphi 0, %s109
    %s111 = sphi 0, %s109
    %s112 = sphi 0, %s111
    %s126 = sphi 0, %s112
    %s130 = sphi 0, %s130
    %s132 = sphi 0, %s130
    %s133 = sphi 0, %s132
    %s147 = sphi 0, %s133
    %s153 = sphi 0, %s155
    %s156 = sphi 0, %s153
    %s157 = sphi 0, %s156
    %s173 = sphi 0, %s157
  $region4: #{classifier_forward.1} parent=0 // loop_header_branch
    %15 = sbr.rel (%p13) target = $region8
  $region5: #{classifier_forward.1} parent=0 // loop_body
    %s17 = ssub.s32 %s12, 1
    %s18 = ssub.s32 %s12, 2
    %s19 = sadd.s32 %s12, 1
    %s20 = ssub.s32 %s12, %s19
    %p21 = scmp.eq.s32.totalorder %s20, 0
    %s23 = sadd.s32 %s22, 1
    %s24 = scalar_select %p21, %s22, %s23
    %p27 = pneg %p21
    %p28 = scmp.eq.s32.totalorder %s12, 3
    %p29 = por %p27, %p28
    %p30 = scmp.ne.s32.totalorder %s22, %s25
    %p31 = scmp.eq.s32.totalorder %s12, 0
    %p32 = por %p30, %p31
    %p33 = scmp.ne.s32.totalorder %s22, %s25
    %p34 = scmp.eq.s32.totalorder %s17, 3
    %p35 = por %p33, %p34
    %p36 = scmp.ne.s32.totalorder %s25, %s26
    %p37 = scmp.eq.s32.totalorder %s17, 0
    %p38 = por %p36, %p37
    %p39 = scmp.ne.s32.totalorder %s25, %s26
    %p40 = scmp.eq.s32.totalorder %s18, 3
    %p41 = por %p39, %p40
    %p43 = scmp.ne.s32.totalorder %s26, %s42
    %p44 = scmp.eq.s32.totalorder %s18, 0
    %p45 = por %p43, %p44
    %s47 = sadd.s32 %s46, 1
    %p50 = scmp.eq.s32.totalorder %s12, 3
    %p51 = scmp.ne.s32.totalorder %s46, %s48
    %p52 = scmp.eq.s32.totalorder %s12, 0
    %p53 = por %p51, %p52
    %p54 = scmp.ne.s32.totalorder %s46, %s48
    %p55 = scmp.eq.s32.totalorder %s17, 3
    %p56 = por %p54, %p55
    %p57 = scmp.ne.s32.totalorder %s48, %s49
    %p58 = scmp.eq.s32.totalorder %s17, 0
    %p59 = por %p57, %p58
    %p60 = scmp.ne.s32.totalorder %s48, %s49
    %p61 = scmp.eq.s32.totalorder %s18, 3
    %p62 = por %p60, %p61
    %p64 = scmp.ne.s32.totalorder %s49, %s63
    %p65 = scmp.eq.s32.totalorder %s18, 0
    %p66 = por %p64, %p65
    %s68 = sadd.s32 %s67, 1
    %p71 = scmp.eq.s32.totalorder %s12, 3
    %p72 = scmp.ne.s32.totalorder %s67, %s69
    %p73 = scmp.eq.s32.totalorder %s12, 0
    %p74 = por %p72, %p73
    %p75 = scmp.ne.s32.totalorder %s67, %s69
    %p76 = scmp.eq.s32.totalorder %s17, 3
    %p77 = por %p75, %p76
    %p78 = scmp.ne.s32.totalorder %s69, %s70
    %p79 = scmp.eq.s32.totalorder %s17, 0
    %p80 = por %p78, %p79
    %p81 = scmp.ne.s32.totalorder %s69, %s70
    %p82 = scmp.eq.s32.totalorder %s18, 3
    %p83 = por %p81, %p82
    %p85 = scmp.ne.s32.totalorder %s70, %s84
    %p86 = scmp.eq.s32.totalorder %s18, 0
    %p87 = por %p85, %p86
    %s89 = sadd.s32 %s88, 1
    %p92 = scmp.eq.s32.totalorder %s12, 3
    %p93 = scmp.ne.s32.totalorder %s88, %s90
    %p94 = scmp.eq.s32.totalorder %s12, 0
    %p95 = por %p93, %p94
    %p96 = scmp.ne.s32.totalorder %s88, %s90
    %p97 = scmp.eq.s32.totalorder %s17, 3
    %p98 = por %p96, %p97
    %p99 = scmp.ne.s32.totalorder %s90, %s91
    %p100 = scmp.eq.s32.totalorder %s17, 0
    %p101 = por %p99, %p100
    %p102 = scmp.ne.s32.totalorder %s90, %s91
    %p103 = scmp.eq.s32.totalorder %s18, 3
    %p104 = por %p102, %p103
    %p106 = scmp.ne.s32.totalorder %s91, %s105
    %p107 = scmp.eq.s32.totalorder %s18, 0
    %p108 = por %p106, %p107
    %s110 = sadd.s32 %s109, 1
    %p113 = scmp.eq.s32.totalorder %s12, 3
    %p114 = scmp.ne.s32.totalorder %s109, %s111
    %p115 = scmp.eq.s32.totalorder %s12, 0
    %p116 = por %p114, %p115
    %p117 = scmp.ne.s32.totalorder %s109, %s111
    %p118 = scmp.eq.s32.totalorder %s17, 3
    %p119 = por %p117, %p118
    %p120 = scmp.ne.s32.totalorder %s111, %s112
    %p121 = scmp.eq.s32.totalorder %s17, 0
    %p122 = por %p120, %p121
    %p123 = scmp.ne.s32.totalorder %s111, %s112
    %p124 = scmp.eq.s32.totalorder %s18, 3
    %p125 = por %p123, %p124
    %p127 = scmp.ne.s32.totalorder %s112, %s126
    %p128 = scmp.eq.s32.totalorder %s18, 0
    %p129 = por %p127, %p128
    %s131 = sadd.s32 %s130, 1
    %p134 = scmp.eq.s32.totalorder %s12, 3
    %p135 = scmp.ne.s32.totalorder %s130, %s132
    %p136 = scmp.eq.s32.totalorder %s12, 0
    %p137 = por %p135, %p136
    %p138 = scmp.ne.s32.totalorder %s130, %s132
    %p139 = scmp.eq.s32.totalorder %s17, 3
    %p140 = por %p138, %p139
    %p141 = scmp.ne.s32.totalorder %s132, %s133
    %p142 = scmp.eq.s32.totalorder %s17, 0
    %p143 = por %p141, %p142
    %p144 = scmp.ne.s32.totalorder %s132, %s133
    %p145 = scmp.eq.s32.totalorder %s18, 3
    %p146 = por %p144, %p145
    %p148 = scmp.ne.s32.totalorder %s133, %s147
    %p149 = scmp.eq.s32.totalorder %s18, 0
    %p150 = por %p148, %p149
    %s151 = ssub.s32 %s12, %s19
    %p152 = scmp.eq.s32.totalorder %s151, 0
    %s154 = sadd.s32 %s153, 1
    %s155 = scalar_select %p152, %s153, %s154
    %p158 = pneg %p152
    %p159 = scmp.eq.s32.totalorder %s12, 3
    %p160 = por %p158, %p159
    %p161 = scmp.ne.s32.totalorder %s153, %s156
    %p162 = scmp.eq.s32.totalorder %s12, 0
    %p163 = por %p161, %p162
    %p164 = scmp.ne.s32.totalorder %s153, %s156
    %p165 = scmp.eq.s32.totalorder %s17, 3
    %p166 = por %p164, %p165
    %p167 = scmp.ne.s32.totalorder %s156, %s157
    %p168 = scmp.eq.s32.totalorder %s17, 0
    %p169 = por %p167, %p168
    %p170 = scmp.ne.s32.totalorder %s156, %s157
    %p171 = scmp.eq.s32.totalorder %s18, 3
    %p172 = por %p170, %p171
    %p174 = scmp.ne.s32.totalorder %s157, %s173
    %p175 = scmp.eq.s32.totalorder %s18, 0
    %p176 = por %p174, %p175
    %p177 = scmp.le.s32.totalorder 1, %s12
    %p178 = scmp.lt.s32.totalorder %s12, 5
    %p179 = pnand %p177, %p178
    %p180 = pneg %p179
    // Predicated region
    $region9: #{classifier_forward.1} parent=5 // pred_check
      _
    $region10: #{classifier_forward.1} parent=5 // pred_check_branch
      %182 = sbr.rel (%p179) target = $region12
    $region11: #{classifier_forward.1} parent=5 // pred_region
      %s183 = ssub.s32 %s12, 1
      // Predicated region
      $region13: #{classifier_forward.1} parent=11 // pred_check
        %p184 = pneg %p59
      $region14: #{classifier_forward.1} parent=11 // pred_check_branch
        %186 = sbr.rel (%p184) target = $region16
      $region15: #{classifier_forward.1} parent=11 // pred_region
        _
      $region16: #{classifier_forward.1} parent=11 // pred_fallthru
        _
      // Predicated region
      $region17: #{classifier_forward.1} parent=11 // pred_check
        %p187 = pneg %p80
      $region18: #{classifier_forward.1} parent=11 // pred_check_branch
        %189 = sbr.rel (%p187) target = $region20
      $region19: #{classifier_forward.1} parent=11 // pred_region
        _
      $region20: #{classifier_forward.1} parent=11 // pred_fallthru
        _
      // Predicated region
      $region21: #{classifier_forward.1} parent=11 // pred_check
        %p190 = pneg %p101
      $region22: #{classifier_forward.1} parent=11 // pred_check_branch
        %192 = sbr.rel (%p190) target = $region24
      $region23: #{classifier_forward.1} parent=11 // pred_region
        _
      $region24: #{classifier_forward.1} parent=11 // pred_fallthru
        _
      // Predicated region
      $region25: #{classifier_forward.1} parent=11 // pred_check
        %p193 = pneg %p122
      $region26: #{classifier_forward.1} parent=11 // pred_check_branch
        %195 = sbr.rel (%p193) target = $region28
      $region27: #{classifier_forward.1} parent=11 // pred_region
        _
      $region28: #{classifier_forward.1} parent=11 // pred_fallthru
        _
      // Predicated region
      $region29: #{classifier_forward.1} parent=11 // pred_check
        %p196 = pneg %p143
      $region30: #{classifier_forward.1} parent=11 // pred_check_branch
        %198 = sbr.rel (%p196) target = $region32
      $region31: #{classifier_forward.1} parent=11 // pred_region
        _
      $region32: #{classifier_forward.1} parent=11 // pred_fallthru
        _
    $region12: #{classifier_forward.1} parent=5 // pred_fallthru
      _
    %p199 = scmp.lt.s32.totalorder %s12, 4
    // Predicated region
    $region33: #{classifier_forward.1} parent=5 // pred_check
      %p200 = pneg %p199
    $region34: #{classifier_forward.1} parent=5 // pred_check_branch
      %202 = sbr.rel (%p200) target = $region36
    $region35: #{classifier_forward.1} parent=5 // pred_region
      // Predicated region
      $region37: #{classifier_forward.1} parent=35 // pred_check
        %p203 = pneg %p32
      $region38: #{classifier_forward.1} parent=35 // pred_check_branch
        %205 = sbr.rel (%p203) target = $region40
      $region39: #{classifier_forward.1} parent=35 // pred_region
        %s206 = smul.u32 8, %s12
        %s207 = ssub.s32 25, %s206
        %p208 = scmp.lt.s32.totalorder %s207, 8
        %s209 = scalar_select %p208, %s207, 8
        %s210 = smul.u32 8, %s209
        %p211 = scmp.lt.s32.totalorder %s206, 24
        %s212 = scalar_select %p211, %s206, 24
        %s213 = smul.addr %s212, 8
        %s214 = scalar_lea.vmem %s0, %s213
        %s215 = smul.u32 8, %s12
        %s216 = ssub.s32 25, %s215
        %p217 = scmp.lt.s32.totalorder %s216, 8
        %s218 = scalar_select %p217, %s216, 8
        %s219 = smul.u32 8, %s218
      $region40: #{classifier_forward.1} parent=35 // pred_fallthru
        _
    $region36: #{classifier_forward.1} parent=5 // pred_fallthru
      _
    %p220 = scmp.le.s32.totalorder 1, %s12
    %p221 = scmp.lt.s32.totalorder %s12, 5
    %p222 = pnand %p220, %p221
    %p223 = pneg %p222
    // Predicated region
    $region41: #{classifier_forward.1} parent=5 // pred_check
      _
    $region42: #{classifier_forward.1} parent=5 // pred_check_branch
      %225 = sbr.rel (%p222) target = $region44
    $region43: #{classifier_forward.1} parent=5 // pred_region
      %s226 = ssub.s32 %s12, 1
      %s227 = smul.u32 8, %s17
      %s228 = ssub.s32 25, %s227
      %p229 = scmp.lt.s32.totalorder %s228, 8
      %s230 = scalar_select %p229, %s228, 8
      %s231 = smul.u32 8, %s230
      %p232 = scmp.lt.s32.totalorder %s227, 24
      %s233 = scalar_select %p232, %s227, 24
      %s234 = smul.addr %s233, 8
      %s235 = scalar_lea.vmem %s0, %s234
      %p236 = pneg %p38
      %p237 = pneg %p35
      %p238 = pneg %p59
      %p239 = pneg %p56
      %p240 = pneg %p80
      %p241 = pneg %p77
      %p242 = pneg %p101
      %p243 = pneg %p98
      %p244 = pneg %p122
      %p245 = pneg %p119
      %p246 = pneg %p143
      %p247 = pneg %p140
      %p248 = pneg %p169
      %p249 = pneg %p166
      %s250 = smul.u32 8, %s17
      %p251 = scmp.lt.s32.totalorder %s250, 31
      %s252 = scalar_select %p251, %s250, 31
      %s253 = smul.addr %s252, 8
      %s254 = scalar_lea.vmem %s6, %s253
      %s255 = smul.u32 8, %s17
      %s256 = ssub.s32 25, %s255
      %p257 = scmp.lt.s32.totalorder %s256, 8
      %s258 = scalar_select %p257, %s256, 8
      %s259 = smul.u32 8, %s258
      %p260 = scmp.lt.s32.totalorder %s255, 24
      %s261 = scalar_select %p260, %s255, 24
      %s262 = smul.addr %s261, 8
      %s263 = scalar_lea.vmem %s0, %s262
      %s264 = smul.u32 8, %s17
      %s265 = ssub.s32 25, %s264
      %p266 = scmp.lt.s32.totalorder %s265, 8
      %s267 = scalar_select %p266, %s265, 8
      %s268 = smul.u32 8, %s267
      %s269 = smul.u32 8, %s17
      %p270 = scmp.lt.s32.totalorder %s269, 31
      %s271 = scalar_select %p270, %s269, 31
      %s272 = smul.addr %s271, 8
      %s273 = scalar_lea.vmem %s6, %s272
      %s274 = smul.u32 8, %s17
      %v276 = vld [vmem:[%s263] sm:$0xff]
      %v277 = vld [vmem:[%s263 + $0x8] sm:$0xff]
      %v278 = vld [vmem:[%s263 + $0x10] sm:$0xff]
      %v279 = vld [vmem:[%s263 + $0x18] sm:$0xff]
      %v280 = vld [vmem:[%s263 + $0x20] sm:$0xff]
      %v281 = vld [vmem:[%s263 + $0x28] sm:$0xff]
      %v282 = vld [vmem:[%s263 + $0x30] sm:$0xff]
      %v283 = vld [vmem:[%s263 + $0x38] sm:$0xff]
      %v284 = vpack.c.bf16 %v277, %v276
      %v285 = vpack.c.bf16 %v279, %v278
      %v286 = vpack.c.bf16 %v281, %v280
      %v287 = vpack.c.bf16 %v283, %v282
      %v288 = vld [vmem:[%s2] ss:$4 sm:$0x7]
      %v289 = vld [vmem:[%s1] sm:$0xff]
      %v290 = vld [vmem:[%s1 + $0x8] sm:$0xf]
      %v291 = vld [vmem:[%s1 + $0xc] sm:$0xff]
      %v292 = vld [vmem:[%s1 + $0x14] sm:$0xf]
      %v293 = vld [vmem:[%s1 + $0x18] sm:$0xff]
      %v294 = vld [vmem:[%s1 + $0x20] sm:$0xf]
      %v295 = vld [vmem:[%s1 + $0x24] sm:$0xff]
      %v296 = vld [vmem:[%s1 + $0x2c] sm:$0xf]
      %v298 = vperm.slane %v288, 0
      %v299 = vperm.slane %v288, 1
      %v300 = vperm.slane %v288, 2
      %v312 = vunpack.c.l.b16 %v289
      %v313 = vunpack.c.h.b16 %v289
      %v314 = vunpack.c.l.b16 %v290
      %v315 = vunpack.c.l.b16 %v291
      %v316 = vunpack.c.h.b16 %v291
      %v317 = vunpack.c.l.b16 %v292
      %v318 = vunpack.c.l.b16 %v293
      %v319 = vunpack.c.h.b16 %v293
      %v320 = vunpack.c.l.b16 %v294
      %v321 = vunpack.c.l.b16 %v295
      %v322 = vunpack.c.h.b16 %v295
      %v323 = vunpack.c.l.b16 %v296
      %v324 = vpack.c.b16 %v315, %v312
      %v325 = vpack.c.b16 %v316, %v313
      %v326 = vpack.c.b16 %v317, %v314
      %v327 = vpack.c.b16 %v321, %v318
      %v328 = vpack.c.b16 %v322, %v319
      %v329 = vpack.c.b16 %v323, %v320
      %vm336 = vcmask 261120
      %v338 = vsel %vm336, %v284, 0
      %v341 = vsel %vm336, %v285, 0
      %v344 = vsel %vm336, %v286, 0
      %v347 = vsel %vm336, %v287, 0
      %349 = vmatpush.bf16.msra.mxu0 0
      %350 = vmatpush.bf16.msra.mxu0 0
      %351 = vmatpush.bf16.msra.mxu0 0
      %352 = vmatpush.bf16.msra.mxu0 0
      %353 = vmatpush.bf16.msra.mxu0 0
      %354 = vmatpush.bf16.msra.mxu0 0
      %355 = vmatpush.bf16.msra.mxu0 %v327
      %356 = vmatpush.bf16.msra.mxu0 %v324
      %357 = vmatmul.bf16.gmra.mxu0 %v338
      %v358 = vpop.f32.mrf.mxu0
      %v359 = vadd.f32 %v298, %v358
      %v360 = vpop.f32.mrf.mxu0
      %v361 = vadd.f32 %v298, %v360
      %362 = vmatmul.bf16.gmra.mxu0 %v341
      %v363 = vpop.f32.mrf.mxu0
      %v364 = vadd.f32 %v298, %v363
      %v365 = vpop.f32.mrf.mxu0
      %v366 = vadd.f32 %v298, %v365
      %367 = vmatmul.bf16.gmra.mxu0 %v344
      %v368 = vpop.f32.mrf.mxu0
      %v369 = vadd.f32 %v298, %v368
      %v370 = vpop.f32.mrf.mxu0
      %v371 = vadd.f32 %v298, %v370
      %372 = vmatmul.bf16.gmra.mxu0 %v347
      %v373 = vpop.f32.mrf.mxu0
      %v374 = vadd.f32 %v298, %v373
      %v375 = vpop.f32.mrf.mxu0
      %v376 = vadd.f32 %v298, %v375
      %377 = vdwg.mxu0
      %378 = vmatpush.bf16.msra.mxu0 0
      %379 = vmatpush.bf16.msra.mxu0 0
      %380 = vmatpush.bf16.msra.mxu0 0
      %381 = vmatpush.bf16.msra.mxu0 0
      %382 = vmatpush.bf16.msra.mxu0 0
      %383 = vmatpush.bf16.msra.mxu0 0
      %384 = vmatpush.bf16.msra.mxu0 %v328
      %385 = vmatpush.bf16.msra.mxu0 %v325
      %386 = vmatmul.bf16.gmra.mxu0 %v338
      %v387 = vpop.f32.mrf.mxu0
      %v388 = vadd.f32 %v299, %v387
      %v389 = vpop.f32.mrf.mxu0
      %v390 = vadd.f32 %v299, %v389
      %391 = vmatmul.bf16.gmra.mxu0 %v341
      %v392 = vpop.f32.mrf.mxu0
      %v393 = vadd.f32 %v299, %v392
      %v394 = vpop.f32.mrf.mxu0
      %v395 = vadd.f32 %v299, %v394
      %396 = vmatmul.bf16.gmra.mxu0 %v344
      %v397 = vpop.f32.mrf.mxu0
      %v398 = vadd.f32 %v299, %v397
      %v399 = vpop.f32.mrf.mxu0
      %v400 = vadd.f32 %v299, %v399
      %401 = vmatmul.bf16.gmra.mxu0 %v347
      %v402 = vpop.f32.mrf.mxu0
      %v403 = vadd.f32 %v299, %v402
      %v404 = vpop.f32.mrf.mxu0
      %v405 = vadd.f32 %v299, %v404
      %406 = vdwg.mxu0
      %407 = vmatpush.bf16.msra.mxu0 0
      %408 = vmatpush.bf16.msra.mxu0 0
      %409 = vmatpush.bf16.msra.mxu0 0
      %410 = vmatpush.bf16.msra.mxu0 0
      %411 = vmatpush.bf16.msra.mxu0 0
      %412 = vmatpush.bf16.msra.mxu0 0
      %413 = vmatpush.bf16.msra.mxu0 %v329
      %414 = vmatpush.bf16.msra.mxu0 %v326
      %415 = vmatmul.bf16.gmra.mxu0 %v338
      %v416 = vpop.f32.mrf.mxu0
      %v417 = vadd.f32 %v300, %v416
      %v418 = vpop.f32.mrf.mxu0
      %v419 = vadd.f32 %v300, %v418
      %420 = vmatmul.bf16.gmra.mxu0 %v341
      %v421 = vpop.f32.mrf.mxu0
      %v422 = vadd.f32 %v300, %v421
      %v423 = vpop.f32.mrf.mxu0
      %v424 = vadd.f32 %v300, %v423
      %425 = vmatmul.bf16.gmra.mxu0 %v344
      %v426 = vpop.f32.mrf.mxu0
      %v427 = vadd.f32 %v300, %v426
      %v428 = vpop.f32.mrf.mxu0
      %v429 = vadd.f32 %v300, %v428
      %430 = vmatmul.bf16.gmra.mxu0 %v347
      %v431 = vpop.f32.mrf.mxu0
      %v432 = vadd.f32 %v300, %v431
      %v433 = vpop.f32.mrf.mxu0
      %v434 = vadd.f32 %v300, %v433
      %435 = vdwg.mxu0
      %v436 = vxor.u32 %v359, 2147483648
      %v437 = vxor.u32 %v361, 2147483648
      %v438 = vxor.u32 %v364, 2147483648
      %v439 = vxor.u32 %v366, 2147483648
      %v440 = vxor.u32 %v369, 2147483648
      %v441 = vxor.u32 %v371, 2147483648
      %v442 = vxor.u32 %v374, 2147483648
      %v443 = vxor.u32 %v376, 2147483648
      %v444 = vmul.f32 %v436, 1.442695
      %v445 = vpow.pop %v444
      %v446 = vmul.f32 %v437, 1.442695
      %v447 = vpow.pop %v446
      %v448 = vmul.f32 %v438, 1.442695
      %v449 = vpow.pop %v448
      %v450 = vmul.f32 %v439, 1.442695
      %v451 = vpow.pop %v450
      %v452 = vmul.f32 %v440, 1.442695
      %v453 = vpow.pop %v452
      %v454 = vmul.f32 %v441, 1.442695
      %v455 = vpow.pop %v454
      %v456 = vmul.f32 %v442, 1.442695
      %v457 = vpow.pop %v456
      %v458 = vmul.f32 %v443, 1.442695
      %v459 = vpow.pop %v458
      %v460 = vadd.f32 %v445, 1.0
      %v461 = vadd.f32 %v447, 1.0
      %v462 = vadd.f32 %v449, 1.0
      %v463 = vadd.f32 %v451, 1.0
      %v464 = vadd.f32 %v453, 1.0
      %v465 = vadd.f32 %v455, 1.0
      %v466 = vadd.f32 %v457, 1.0
      %v467 = vadd.f32 %v459, 1.0
      %v468 = vrcp.pop %v460
      %v469 = vmul.f32 %v460, %v468
      %v470 = vsub.f32 1.0, %v469
      %v471 = vmul.f32 %v468, %v470
      %v472 = vadd.f32 %v468, %v471
      %vm473 = vweird.f32 %v460
      %vm474 = vweird.f32 %v468
      %vm475 = vmor %vm473, %vm474
      %v476 = vsel %vm475, %v468, %v472
      %v477 = vand.u32 2147483647, %v460
      %vm478 = vcmp.eq.f32.partialorder %v477, 8.507059e+37
      %v479 = vand.u32 %v460, 2147483648
      %v480 = vor.u32 1.1754944e-38, %v479
      %v481 = vsel %vm478, %v480, %v476
      %v482 = vmul.f32 1.0, %v481
      %v483 = vrcp.pop %v461
      %v484 = vmul.f32 %v461, %v483
      %v485 = vsub.f32 1.0, %v484
      %v486 = vmul.f32 %v483, %v485
      %v487 = vadd.f32 %v483, %v486
      %vm488 = vweird.f32 %v461
      %vm489 = vweird.f32 %v483
      %vm490 = vmor %vm488, %vm489
      %v491 = vsel %vm490, %v483, %v487
      %v492 = vand.u32 2147483647, %v461
      %vm493 = vcmp.eq.f32.partialorder %v492, 8.507059e+37
      %v494 = vand.u32 %v461, 2147483648
      %v495 = vor.u32 1.1754944e-38, %v494
      %v496 = vsel %vm493, %v495, %v491
      %v497 = vmul.f32 1.0, %v496
      %v498 = vrcp.pop %v462
      %v499 = vmul.f32 %v462, %v498
      %v500 = vsub.f32 1.0, %v499
      %v501 = vmul.f32 %v498, %v500
      %v502 = vadd.f32 %v498, %v501
      %vm503 = vweird.f32 %v462
      %vm504 = vweird.f32 %v498
      %vm505 = vmor %vm503, %vm504
      %v506 = vsel %vm505, %v498, %v502
      %v507 = vand.u32 2147483647, %v462
      %vm508 = vcmp.eq.f32.partialorder %v507, 8.507059e+37
      %v509 = vand.u32 %v462, 2147483648
      %v510 = vor.u32 1.1754944e-38, %v509
      %v511 = vsel %vm508, %v510, %v506
      %v512 = vmul.f32 1.0, %v511
      %v513 = vrcp.pop %v463
      %v514 = vmul.f32 %v463, %v513
      %v515 = vsub.f32 1.0, %v514
      %v516 = vmul.f32 %v513, %v515
      %v517 = vadd.f32 %v513, %v516
      %vm518 = vweird.f32 %v463
      %vm519 = vweird.f32 %v513
      %vm520 = vmor %vm518, %vm519
      %v521 = vsel %vm520, %v513, %v517
      %v522 = vand.u32 2147483647, %v463
      %vm523 = vcmp.eq.f32.partialorder %v522, 8.507059e+37
      %v524 = vand.u32 %v463, 2147483648
      %v525 = vor.u32 1.1754944e-38, %v524
      %v526 = vsel %vm523, %v525, %v521
      %v527 = vmul.f32 1.0, %v526
      %v528 = vrcp.pop %v464
      %v529 = vmul.f32 %v464, %v528
      %v530 = vsub.f32 1.0, %v529
      %v531 = vmul.f32 %v528, %v530
      %v532 = vadd.f32 %v528, %v531
      %vm533 = vweird.f32 %v464
      %vm534 = vweird.f32 %v528
      %vm535 = vmor %vm533, %vm534
      %v536 = vsel %vm535, %v528, %v532
      %v537 = vand.u32 2147483647, %v464
      %vm538 = vcmp.eq.f32.partialorder %v537, 8.507059e+37
      %v539 = vand.u32 %v464, 2147483648
      %v540 = vor.u32 1.1754944e-38, %v539
      %v541 = vsel %vm538, %v540, %v536
      %v542 = vmul.f32 1.0, %v541
      %v543 = vrcp.pop %v465
      %v544 = vmul.f32 %v465, %v543
      %v545 = vsub.f32 1.0, %v544
      %v546 = vmul.f32 %v543, %v545
      %v547 = vadd.f32 %v543, %v546
      %vm548 = vweird.f32 %v465
      %vm549 = vweird.f32 %v543
      %vm550 = vmor %vm548, %vm549
      %v551 = vsel %vm550, %v543, %v547
      %v552 = vand.u32 2147483647, %v465
      %vm553 = vcmp.eq.f32.partialorder %v552, 8.507059e+37
      %v554 = vand.u32 %v465, 2147483648
      %v555 = vor.u32 1.1754944e-38, %v554
      %v556 = vsel %vm553, %v555, %v551
      %v557 = vmul.f32 1.0, %v556
      %v558 = vrcp.pop %v466
      %v559 = vmul.f32 %v466, %v558
      %v560 = vsub.f32 1.0, %v559
      %v561 = vmul.f32 %v558, %v560
      %v562 = vadd.f32 %v558, %v561
      %vm563 = vweird.f32 %v466
      %vm564 = vweird.f32 %v558
      %vm565 = vmor %vm563, %vm564
      %v566 = vsel %vm565, %v558, %v562
      %v567 = vand.u32 2147483647, %v466
      %vm568 = vcmp.eq.f32.partialorder %v567, 8.507059e+37
      %v569 = vand.u32 %v466, 2147483648
      %v570 = vor.u32 1.1754944e-38, %v569
      %v571 = vsel %vm568, %v570, %v566
      %v572 = vmul.f32 1.0, %v571
      %v573 = vrcp.pop %v467
      %v574 = vmul.f32 %v467, %v573
      %v575 = vsub.f32 1.0, %v574
      %v576 = vmul.f32 %v573, %v575
      %v577 = vadd.f32 %v573, %v576
      %vm578 = vweird.f32 %v467
      %vm579 = vweird.f32 %v573
      %vm580 = vmor %vm578, %vm579
      %v581 = vsel %vm580, %v573, %v577
      %v582 = vand.u32 2147483647, %v467
      %vm583 = vcmp.eq.f32.partialorder %v582, 8.507059e+37
      %v584 = vand.u32 %v467, 2147483648
      %v585 = vor.u32 1.1754944e-38, %v584
      %v586 = vsel %vm583, %v585, %v581
      %v587 = vmul.f32 1.0, %v586
      %v588 = vxor.u32 %v388, 2147483648
      %v589 = vxor.u32 %v390, 2147483648
      %v590 = vxor.u32 %v393, 2147483648
      %v591 = vxor.u32 %v395, 2147483648
      %v592 = vxor.u32 %v398, 2147483648
      %v593 = vxor.u32 %v400, 2147483648
      %v594 = vxor.u32 %v403, 2147483648
      %v595 = vxor.u32 %v405, 2147483648
      %v596 = vmul.f32 %v588, 1.442695
      %v597 = vpow.pop %v596
      %v598 = vmul.f32 %v589, 1.442695
      %v599 = vpow.pop %v598
      %v600 = vmul.f32 %v590, 1.442695
      %v601 = vpow.pop %v600
      %v602 = vmul.f32 %v591, 1.442695
      %v603 = vpow.pop %v602
      %v604 = vmul.f32 %v592, 1.442695
      %v605 = vpow.pop %v604
      %v606 = vmul.f32 %v593, 1.442695
      %v607 = vpow.pop %v606
      %v608 = vmul.f32 %v594, 1.442695
      %v609 = vpow.pop %v608
      %v610 = vmul.f32 %v595, 1.442695
      %v611 = vpow.pop %v610
      %v612 = vadd.f32 %v597, 1.0
      %v613 = vadd.f32 %v599, 1.0
      %v614 = vadd.f32 %v601, 1.0
      %v615 = vadd.f32 %v603, 1.0
      %v616 = vadd.f32 %v605, 1.0
      %v617 = vadd.f32 %v607, 1.0
      %v618 = vadd.f32 %v609, 1.0
      %v619 = vadd.f32 %v611, 1.0
      %v620 = vrcp.pop %v612
      %v621 = vmul.f32 %v612, %v620
      %v622 = vsub.f32 1.0, %v621
      %v623 = vmul.f32 %v620, %v622
      %v624 = vadd.f32 %v620, %v623
      %vm625 = vweird.f32 %v612
      %vm626 = vweird.f32 %v620
      %vm627 = vmor %vm625, %vm626
      %v628 = vsel %vm627, %v620, %v624
      %v629 = vand.u32 2147483647, %v612
      %vm630 = vcmp.eq.f32.partialorder %v629, 8.507059e+37
      %v631 = vand.u32 %v612, 2147483648
      %v632 = vor.u32 1.1754944e-38, %v631
      %v633 = vsel %vm630, %v632, %v628
      %v634 = vmul.f32 1.0, %v633
      %v635 = vrcp.pop %v613
      %v636 = vmul.f32 %v613, %v635
      %v637 = vsub.f32 1.0, %v636
      %v638 = vmul.f32 %v635, %v637
      %v639 = vadd.f32 %v635, %v638
      %vm640 = vweird.f32 %v613
      %vm641 = vweird.f32 %v635
      %vm642 = vmor %vm640, %vm641
      %v643 = vsel %vm642, %v635, %v639
      %v644 = vand.u32 2147483647, %v613
      %vm645 = vcmp.eq.f32.partialorder %v644, 8.507059e+37
      %v646 = vand.u32 %v613, 2147483648
      %v647 = vor.u32 1.1754944e-38, %v646
      %v648 = vsel %vm645, %v647, %v643
      %v649 = vmul.f32 1.0, %v648
      %v650 = vrcp.pop %v614
      %v651 = vmul.f32 %v614, %v650
      %v652 = vsub.f32 1.0, %v651
      %v653 = vmul.f32 %v650, %v652
      %v654 = vadd.f32 %v650, %v653
      %vm655 = vweird.f32 %v614
      %vm656 = vweird.f32 %v650
      %vm657 = vmor %vm655, %vm656
      %v658 = vsel %vm657, %v650, %v654
      %v659 = vand.u32 2147483647, %v614
      %vm660 = vcmp.eq.f32.partialorder %v659, 8.507059e+37
      %v661 = vand.u32 %v614, 2147483648
      %v662 = vor.u32 1.1754944e-38, %v661
      %v663 = vsel %vm660, %v662, %v658
      %v664 = vmul.f32 1.0, %v663
      %v665 = vrcp.pop %v615
      %v666 = vmul.f32 %v615, %v665
      %v667 = vsub.f32 1.0, %v666
      %v668 = vmul.f32 %v665, %v667
      %v669 = vadd.f32 %v665, %v668
      %vm670 = vweird.f32 %v615
      %vm671 = vweird.f32 %v665
      %vm672 = vmor %vm670, %vm671
      %v673 = vsel %vm672, %v665, %v669
      %v674 = vand.u32 2147483647, %v615
      %vm675 = vcmp.eq.f32.partialorder %v674, 8.507059e+37
      %v676 = vand.u32 %v615, 2147483648
      %v677 = vor.u32 1.1754944e-38, %v676
      %v678 = vsel %vm675, %v677, %v673
      %v679 = vmul.f32 1.0, %v678
      %v680 = vrcp.pop %v616
      %v681 = vmul.f32 %v616, %v680
      %v682 = vsub.f32 1.0, %v681
      %v683 = vmul.f32 %v680, %v682
      %v684 = vadd.f32 %v680, %v683
      %vm685 = vweird.f32 %v616
      %vm686 = vweird.f32 %v680
      %vm687 = vmor %vm685, %vm686
      %v688 = vsel %vm687, %v680, %v684
      %v689 = vand.u32 2147483647, %v616
      %vm690 = vcmp.eq.f32.partialorder %v689, 8.507059e+37
      %v691 = vand.u32 %v616, 2147483648
      %v692 = vor.u32 1.1754944e-38, %v691
      %v693 = vsel %vm690, %v692, %v688
      %v694 = vmul.f32 1.0, %v693
      %v695 = vrcp.pop %v617
      %v696 = vmul.f32 %v617, %v695
      %v697 = vsub.f32 1.0, %v696
      %v698 = vmul.f32 %v695, %v697
      %v699 = vadd.f32 %v695, %v698
      %vm700 = vweird.f32 %v617
      %vm701 = vweird.f32 %v695
      %vm702 = vmor %vm700, %vm701
      %v703 = vsel %vm702, %v695, %v699
      %v704 = vand.u32 2147483647, %v617
      %vm705 = vcmp.eq.f32.partialorder %v704, 8.507059e+37
      %v706 = vand.u32 %v617, 2147483648
      %v707 = vor.u32 1.1754944e-38, %v706
      %v708 = vsel %vm705, %v707, %v703
      %v709 = vmul.f32 1.0, %v708
      %v710 = vrcp.pop %v618
      %v711 = vmul.f32 %v618, %v710
      %v712 = vsub.f32 1.0, %v711
      %v713 = vmul.f32 %v710, %v712
      %v714 = vadd.f32 %v710, %v713
      %vm715 = vweird.f32 %v618
      %vm716 = vweird.f32 %v710
      %vm717 = vmor %vm715, %vm716
      %v718 = vsel %vm717, %v710, %v714
      %v719 = vand.u32 2147483647, %v618
      %vm720 = vcmp.eq.f32.partialorder %v719, 8.507059e+37
      %v721 = vand.u32 %v618, 2147483648
      %v722 = vor.u32 1.1754944e-38, %v721
      %v723 = vsel %vm720, %v722, %v718
      %v724 = vmul.f32 1.0, %v723
      %v725 = vrcp.pop %v619
      %v726 = vmul.f32 %v619, %v725
      %v727 = vsub.f32 1.0, %v726
      %v728 = vmul.f32 %v725, %v727
      %v729 = vadd.f32 %v725, %v728
      %vm730 = vweird.f32 %v619
      %vm731 = vweird.f32 %v725
      %vm732 = vmor %vm730, %vm731
      %v733 = vsel %vm732, %v725, %v729
      %v734 = vand.u32 2147483647, %v619
      %vm735 = vcmp.eq.f32.partialorder %v734, 8.507059e+37
      %v736 = vand.u32 %v619, 2147483648
      %v737 = vor.u32 1.1754944e-38, %v736
      %v738 = vsel %vm735, %v737, %v733
      %v739 = vmul.f32 1.0, %v738
      %v740 = vtanh.pop %v417
      %v741 = vtanh.pop %v419
      %v742 = vtanh.pop %v422
      %v743 = vtanh.pop %v424
      %v744 = vtanh.pop %v427
      %v745 = vtanh.pop %v429
      %v746 = vtanh.pop %v432
      %v747 = vtanh.pop %v434
      %v748 = vmul.f32 %v482, %v740
      %v749 = vmul.f32 %v497, %v741
      %v750 = vmul.f32 %v512, %v742
      %v751 = vmul.f32 %v527, %v743
      %v752 = vmul.f32 %v542, %v744
      %v753 = vmul.f32 %v557, %v745
      %v754 = vmul.f32 %v572, %v746
      %v755 = vmul.f32 %v587, %v747
      %v756 = vtanh.pop %v748
      %v757 = vtanh.pop %v749
      %v758 = vtanh.pop %v750
      %v759 = vtanh.pop %v751
      %v760 = vtanh.pop %v752
      %v761 = vtanh.pop %v753
      %v762 = vtanh.pop %v754
      %v763 = vtanh.pop %v755
      %v764 = vmul.f32 %v634, %v756
      %v765 = vmul.f32 %v649, %v757
      %v766 = vmul.f32 %v664, %v758
      %v767 = vmul.f32 %v679, %v759
      %v768 = vmul.f32 %v694, %v760
      %v769 = vmul.f32 %v709, %v761
      %v770 = vmul.f32 %v724, %v762
      %v771 = vmul.f32 %v739, %v763
      %v772 = vld [vmem:[%s2 + $0x1] sm:$0x1]
      %v773 = vpack.c.bf16 %v765, %v764
      %v774 = vpack.c.bf16 %v767, %v766
      %v775 = vpack.c.bf16 %v769, %v768
      %v776 = vpack.c.bf16 %v771, %v770
      %v777 = vld [vmem:[%s3] sm:$0xf]
      %v778 = vld [vmem:[%s3 + $0x4] sm:$0xf]
      %v779 = vld [vmem:[%s3 + $0x8] sm:$0xf]
      %v780 = vld [vmem:[%s3 + $0xc] sm:$0xf]
      %v781 = vld [vmem:[%s3 + $0x10] sm:$0xf]
      %v782 = vld [vmem:[%s3 + $0x14] sm:$0xf]
      %v783 = vld [vmem:[%s3 + $0x18] sm:$0xf]
      %v784 = vld [vmem:[%s3 + $0x1c] sm:$0xf]
      %v785 = vld [vmem:[%s3 + $0x20] sm:$0xf]
      %v786 = vld [vmem:[%s3 + $0x24] sm:$0xf]
      %v787 = vld [vmem:[%s3 + $0x28] sm:$0xf]
      %v788 = vld [vmem:[%s3 + $0x2c] sm:$0xf]
      %v789 = vld [vmem:[%s3 + $0x30] sm:$0xf]
      %v790 = vld [vmem:[%s3 + $0x34] sm:$0xf]
      %v791 = vld [vmem:[%s3 + $0x38] sm:$0xf]
      %v792 = vld [vmem:[%s3 + $0x3c] sm:$0xf]
      %v793 = vperm.slane %v772, 0
      %v810 = vunpack.c.l.b16 %v777
      %v811 = vunpack.c.l.b16 %v778
      %v812 = vunpack.c.l.b16 %v779
      %v813 = vunpack.c.l.b16 %v780
      %v814 = vunpack.c.l.b16 %v781
      %v815 = vunpack.c.l.b16 %v782
      %v816 = vunpack.c.l.b16 %v783
      %v817 = vunpack.c.l.b16 %v784
      %v818 = vunpack.c.l.b16 %v785
      %v819 = vunpack.c.l.b16 %v786
      %v820 = vunpack.c.l.b16 %v787
      %v821 = vunpack.c.l.b16 %v788
      %v822 = vunpack.c.l.b16 %v789
      %v823 = vunpack.c.l.b16 %v790
      %v824 = vunpack.c.l.b16 %v791
      %v825 = vunpack.c.l.b16 %v792
      %v826 = vpack.c.b16 %v811, %v810
      %v827 = vpack.c.b16 %v813, %v812
      %v828 = vpack.c.b16 %v815, %v814
      %v829 = vpack.c.b16 %v817, %v816
      %v830 = vpack.c.b16 %v819, %v818
      %v831 = vpack.c.b16 %v821, %v820
      %v832 = vpack.c.b16 %v823, %v822
      %v833 = vpack.c.b16 %v825, %v824
      %842 = vmatpush.bf16.msra.mxu0 %v833
      %843 = vmatpush.bf16.msra.mxu0 %v832
      %844 = vmatpush.bf16.msra.mxu0 %v831
      %845 = vmatpush.bf16.msra.mxu0 %v830
      %846 = vmatpush.bf16.msra.mxu0 %v829
      %847 = vmatpush.bf16.msra.mxu0 %v828
      %848 = vmatpush.bf16.msra.mxu0 %v827
      %849 = vmatpush.bf16.msra.mxu0 %v826
      %850 = vmatmul.bf16.gmra.mxu0 %v773
      %v851 = vpop.f32.mrf.mxu0
      %v852 = vadd.f32 %v793, %v851
      %v853 = vpop.f32.mrf.mxu0
      %v854 = vadd.f32 %v793, %v853
      %855 = vmatmul.bf16.gmra.mxu0 %v774
      %v856 = vpop.f32.mrf.mxu0
      %v857 = vadd.f32 %v793, %v856
      %v858 = vpop.f32.mrf.mxu0
      %v859 = vadd.f32 %v793, %v858
      %860 = vmatmul.bf16.gmra.mxu0 %v775
      %v861 = vpop.f32.mrf.mxu0
      %v862 = vadd.f32 %v793, %v861
      %v863 = vpop.f32.mrf.mxu0
      %v864 = vadd.f32 %v793, %v863
      %865 = vmatmul.bf16.gmra.mxu0 %v776
      %v866 = vpop.f32.mrf.mxu0
      %v867 = vadd.f32 %v793, %v866
      %v868 = vpop.f32.mrf.mxu0
      %v869 = vadd.f32 %v793, %v868
      %870 = vdwg.mxu0
      %v871 = vmul.f32 %v852, 0.2
      %v872 = vmul.f32 %v854, 0.2
      %v873 = vmul.f32 %v857, 0.2
      %v874 = vmul.f32 %v859, 0.2
      %v875 = vmul.f32 %v862, 0.2
      %v876 = vmul.f32 %v864, 0.2
      %v877 = vmul.f32 %v867, 0.2
      %v878 = vmul.f32 %v869, 0.2
      %v879 = vmax.f32 %v852, %v871
      %v880 = vmax.f32 %v854, %v872
      %v881 = vmax.f32 %v857, %v873
      %v882 = vmax.f32 %v859, %v874
      %v883 = vmax.f32 %v862, %v875
      %v884 = vmax.f32 %v864, %v876
      %v885 = vmax.f32 %v867, %v877
      %v886 = vmax.f32 %v869, %v878
      %887 = vadd.xlane.f32.xlu0 %v879
      %v888 = vpop.xlane.xlu0 %887
      %889 = vadd.xlane.f32.xlu0 %v880
      %v890 = vpop.xlane.xlu0 %889
      %891 = vadd.xlane.f32.xlu0 %v881
      %v892 = vpop.xlane.xlu0 %891
      %893 = vadd.xlane.f32.xlu0 %v882
      %v894 = vpop.xlane.xlu0 %893
      %895 = vadd.xlane.f32.xlu0 %v883
      %v896 = vpop.xlane.xlu0 %895
      %897 = vadd.xlane.f32.xlu0 %v884
      %v898 = vpop.xlane.xlu0 %897
      %899 = vadd.xlane.f32.xlu0 %v885
      %v900 = vpop.xlane.xlu0 %899
      %901 = vadd.xlane.f32.xlu0 %v886
      %v902 = vpop.xlane.xlu0 %901
      %v903 = vmul.f32 %v888, 0.0078125
      %v904 = vmul.f32 %v890, 0.0078125
      %v905 = vmul.f32 %v892, 0.0078125
      %v906 = vmul.f32 %v894, 0.0078125
      %v907 = vmul.f32 %v896, 0.0078125
      %v908 = vmul.f32 %v898, 0.0078125
      %v909 = vmul.f32 %v900, 0.0078125
      %v910 = vmul.f32 %v902, 0.0078125
      %v911 = vmul.f32 %v879, %v879
      %v912 = vmul.f32 %v880, %v880
      %v913 = vmul.f32 %v881, %v881
      %v914 = vmul.f32 %v882, %v882
      %v915 = vmul.f32 %v883, %v883
      %v916 = vmul.f32 %v884, %v884
      %v917 = vmul.f32 %v885, %v885
      %v918 = vmul.f32 %v886, %v886
      %919 = vadd.xlane.f32.xlu0 %v911
      %v920 = vpop.xlane.xlu0 %919
      %921 = vadd.xlane.f32.xlu0 %v912
      %v922 = vpop.xlane.xlu0 %921
      %923 = vadd.xlane.f32.xlu0 %v913
      %v924 = vpop.xlane.xlu0 %923
      %925 = vadd.xlane.f32.xlu0 %v914
      %v926 = vpop.xlane.xlu0 %925
      %927 = vadd.xlane.f32.xlu0 %v915
      %v928 = vpop.xlane.xlu0 %927
      %929 = vadd.xlane.f32.xlu0 %v916
      %v930 = vpop.xlane.xlu0 %929
      %931 = vadd.xlane.f32.xlu0 %v917
      %v932 = vpop.xlane.xlu0 %931
      %933 = vadd.xlane.f32.xlu0 %v918
      %v934 = vpop.xlane.xlu0 %933
      %v935 = vmul.f32 %v920, 0.0078125
      %v936 = vmul.f32 %v922, 0.0078125
      %v937 = vmul.f32 %v924, 0.0078125
      %v938 = vmul.f32 %v926, 0.0078125
      %v939 = vmul.f32 %v928, 0.0078125
      %v940 = vmul.f32 %v930, 0.0078125
      %v941 = vmul.f32 %v932, 0.0078125
      %v942 = vmul.f32 %v934, 0.0078125
      %v943 = vmul.f32 %v903, %v903
      %v944 = vmul.f32 %v904, %v904
      %v945 = vmul.f32 %v905, %v905
      %v946 = vmul.f32 %v906, %v906
      %v947 = vmul.f32 %v907, %v907
      %v948 = vmul.f32 %v908, %v908
      %v949 = vmul.f32 %v909, %v909
      %v950 = vmul.f32 %v910, %v910
      %v951 = vsub.f32 %v935, %v943
      %v952 = vsub.f32 %v936, %v944
      %v953 = vsub.f32 %v937, %v945
      %v954 = vsub.f32 %v938, %v946
      %v955 = vsub.f32 %v939, %v947
      %v956 = vsub.f32 %v940, %v948
      %v957 = vsub.f32 %v941, %v949
      %v958 = vsub.f32 %v942, %v950
      %v959 = vsub.f32 %v879, %v903
      %v960 = vsub.f32 %v880, %v904
      %v961 = vsub.f32 %v881, %v905
      %v962 = vsub.f32 %v882, %v906
      %v963 = vsub.f32 %v883, %v907
      %v964 = vsub.f32 %v884, %v908
      %v965 = vsub.f32 %v885, %v909
      %v966 = vsub.f32 %v886, %v910
      %v967 = vadd.f32 %v951, 1e-05
      %v968 = vadd.f32 %v952, 1e-05
      %v969 = vadd.f32 %v953, 1e-05
      %v970 = vadd.f32 %v954, 1e-05
      %v971 = vadd.f32 %v955, 1e-05
      %v972 = vadd.f32 %v956, 1e-05
      %v973 = vadd.f32 %v957, 1e-05
      %v974 = vadd.f32 %v958, 1e-05
      %v975 = vrsqrt.pop %v967
      %v976 = vmul.f32 %v975, %v967
      %v977 = vmul.f32 %v976, %v975
      %v978 = vmul.f32 0.5, %v977
      %v979 = vsub.f32 1.5, %v978
      %v980 = vmul.f32 %v975, %v979
      %vm981 = vweird.f32 %v967
      %vm982 = vweird.f32 %v975
      %vm983 = vmor %vm981, %vm982
      %v984 = vsel %vm983, %v975, %v980
      %v985 = vrsqrt.pop %v968
      %v986 = vmul.f32 %v985, %v968
      %v987 = vmul.f32 %v986, %v985
      %v988 = vmul.f32 0.5, %v987
      %v989 = vsub.f32 1.5, %v988
      %v990 = vmul.f32 %v985, %v989
      %vm991 = vweird.f32 %v968
      %vm992 = vweird.f32 %v985
      %vm993 = vmor %vm991, %vm992
      %v994 = vsel %vm993, %v985, %v990
      %v995 = vrsqrt.pop %v969
      %v996 = vmul.f32 %v995, %v969
      %v997 = vmul.f32 %v996, %v995
      %v998 = vmul.f32 0.5, %v997
      %v999 = vsub.f32 1.5, %v998
      %v1000 = vmul.f32 %v995, %v999
      %vm1001 = vweird.f32 %v969
      %vm1002 = vweird.f32 %v995
      %vm1003 = vmor %vm1001, %vm1002
      %v1004 = vsel %vm1003, %v995, %v1000
      %v1005 = vrsqrt.pop %v970
      %v1006 = vmul.f32 %v1005, %v970
      %v1007 = vmul.f32 %v1006, %v1005
      %v1008 = vmul.f32 0.5, %v1007
      %v1009 = vsub.f32 1.5, %v1008
      %v1010 = vmul.f32 %v1005, %v1009
      %vm1011 = vweird.f32 %v970
      %vm1012 = vweird.f32 %v1005
      %vm1013 = vmor %vm1011, %vm1012
      %v1014 = vsel %vm1013, %v1005, %v1010
      %v1015 = vrsqrt.pop %v971
      %v1016 = vmul.f32 %v1015, %v971
      %v1017 = vmul.f32 %v1016, %v1015
      %v1018 = vmul.f32 0.5, %v1017
      %v1019 = vsub.f32 1.5, %v1018
      %v1020 = vmul.f32 %v1015, %v1019
      %vm1021 = vweird.f32 %v971
      %vm1022 = vweird.f32 %v1015
      %vm1023 = vmor %vm1021, %vm1022
      %v1024 = vsel %vm1023, %v1015, %v1020
      %v1025 = vrsqrt.pop %v972
      %v1026 = vmul.f32 %v1025, %v972
      %v1027 = vmul.f32 %v1026, %v1025
      %v1028 = vmul.f32 0.5, %v1027
      %v1029 = vsub.f32 1.5, %v1028
      %v1030 = vmul.f32 %v1025, %v1029
      %vm1031 = vweird.f32 %v972
      %vm1032 = vweird.f32 %v1025
      %vm1033 = vmor %vm1031, %vm1032
      %v1034 = vsel %vm1033, %v1025, %v1030
      %v1035 = vrsqrt.pop %v973
      %v1036 = vmul.f32 %v1035, %v973
      %v1037 = vmul.f32 %v1036, %v1035
      %v1038 = vmul.f32 0.5, %v1037
      %v1039 = vsub.f32 1.5, %v1038
      %v1040 = vmul.f32 %v1035, %v1039
      %vm1041 = vweird.f32 %v973
      %vm1042 = vweird.f32 %v1035
      %vm1043 = vmor %vm1041, %vm1042
      %v1044 = vsel %vm1043, %v1035, %v1040
      %v1045 = vrsqrt.pop %v974
      %v1046 = vmul.f32 %v1045, %v974
      %v1047 = vmul.f32 %v1046, %v1045
      %v1048 = vmul.f32 0.5, %v1047
      %v1049 = vsub.f32 1.5, %v1048
      %v1050 = vmul.f32 %v1045, %v1049
      %vm1051 = vweird.f32 %v974
      %vm1052 = vweird.f32 %v1045
      %vm1053 = vmor %vm1051, %vm1052
      %v1054 = vsel %vm1053, %v1045, %v1050
      %v1055 = vmul.f32 %v959, %v984
      %v1056 = vmul.f32 %v960, %v994
      %v1057 = vmul.f32 %v961, %v1004
      %v1058 = vmul.f32 %v962, %v1014
      %v1059 = vmul.f32 %v963, %v1024
      %v1060 = vmul.f32 %v964, %v1034
      %v1061 = vmul.f32 %v965, %v1044
      %v1062 = vmul.f32 %v966, %v1054
      %v1063 = vld [vmem:[%s2 + $0x2] sm:$0x1]
      %v1064 = vpack.c.bf16 %v1056, %v1055
      %v1065 = vpack.c.bf16 %v1058, %v1057
      %v1066 = vpack.c.bf16 %v1060, %v1059
      %v1067 = vpack.c.bf16 %v1062, %v1061
      %v1068 = vld [vmem:[%s4] sm:$0xf]
      %v1069 = vld [vmem:[%s4 + $0x4] sm:$0xf]
      %v1070 = vld [vmem:[%s4 + $0x8] sm:$0xf]
      %v1071 = vld [vmem:[%s4 + $0xc] sm:$0xf]
      %v1072 = vld [vmem:[%s4 + $0x10] sm:$0xf]
      %v1073 = vld [vmem:[%s4 + $0x14] sm:$0xf]
      %v1074 = vld [vmem:[%s4 + $0x18] sm:$0xf]
      %v1075 = vld [vmem:[%s4 + $0x1c] sm:$0xf]
      %v1076 = vld [vmem:[%s4 + $0x20] sm:$0xf]
      %v1077 = vld [vmem:[%s4 + $0x24] sm:$0xf]
      %v1078 = vld [vmem:[%s4 + $0x28] sm:$0xf]
      %v1079 = vld [vmem:[%s4 + $0x2c] sm:$0xf]
      %v1080 = vld [vmem:[%s4 + $0x30] sm:$0xf]
      %v1081 = vld [vmem:[%s4 + $0x34] sm:$0xf]
      %v1082 = vld [vmem:[%s4 + $0x38] sm:$0xf]
      %v1083 = vld [vmem:[%s4 + $0x3c] sm:$0xf]
      %v1084 = vperm.slane %v1063, 0
      %v1101 = vunpack.c.l.b16 %v1068
      %v1102 = vunpack.c.l.b16 %v1069
      %v1103 = vunpack.c.l.b16 %v1070
      %v1104 = vunpack.c.l.b16 %v1071
      %v1105 = vunpack.c.l.b16 %v1072
      %v1106 = vunpack.c.l.b16 %v1073
      %v1107 = vunpack.c.l.b16 %v1074
      %v1108 = vunpack.c.l.b16 %v1075
      %v1109 = vunpack.c.l.b16 %v1076
      %v1110 = vunpack.c.l.b16 %v1077
      %v1111 = vunpack.c.l.b16 %v1078
      %v1112 = vunpack.c.l.b16 %v1079
      %v1113 = vunpack.c.l.b16 %v1080
      %v1114 = vunpack.c.l.b16 %v1081
      %v1115 = vunpack.c.l.b16 %v1082
      %v1116 = vunpack.c.l.b16 %v1083
      %v1117 = vpack.c.b16 %v1102, %v1101
      %v1118 = vpack.c.b16 %v1104, %v1103
      %v1119 = vpack.c.b16 %v1106, %v1105
      %v1120 = vpack.c.b16 %v1108, %v1107
      %v1121 = vpack.c.b16 %v1110, %v1109
      %v1122 = vpack.c.b16 %v1112, %v1111
      %v1123 = vpack.c.b16 %v1114, %v1113
      %v1124 = vpack.c.b16 %v1116, %v1115
      %1133 = vmatpush.bf16.msra.mxu0 %v1124
      %1134 = vmatpush.bf16.msra.mxu0 %v1123
      %1135 = vmatpush.bf16.msra.mxu0 %v1122
      %1136 = vmatpush.bf16.msra.mxu0 %v1121
      %1137 = vmatpush.bf16.msra.mxu0 %v1120
      %1138 = vmatpush.bf16.msra.mxu0 %v1119
      %1139 = vmatpush.bf16.msra.mxu0 %v1118
      %1140 = vmatpush.bf16.msra.mxu0 %v1117
      %1141 = vmatmul.bf16.gmra.mxu0 %v1064
      %v1142 = vpop.f32.mrf.mxu0
      %v1143 = vadd.f32 %v1084, %v1142
      %v1144 = vpop.f32.mrf.mxu0
      %v1145 = vadd.f32 %v1084, %v1144
      %1146 = vmatmul.bf16.gmra.mxu0 %v1065
      %v1147 = vpop.f32.mrf.mxu0
      %v1148 = vadd.f32 %v1084, %v1147
      %v1149 = vpop.f32.mrf.mxu0
      %v1150 = vadd.f32 %v1084, %v1149
      %1151 = vmatmul.bf16.gmra.mxu0 %v1066
      %v1152 = vpop.f32.mrf.mxu0
      %v1153 = vadd.f32 %v1084, %v1152
      %v1154 = vpop.f32.mrf.mxu0
      %v1155 = vadd.f32 %v1084, %v1154
      %1156 = vmatmul.bf16.gmra.mxu0 %v1067
      %v1157 = vpop.f32.mrf.mxu0
      %v1158 = vadd.f32 %v1084, %v1157
      %v1159 = vpop.f32.mrf.mxu0
      %v1160 = vadd.f32 %v1084, %v1159
      %1161 = vdwg.mxu0
      %v1162 = vmul.f32 %v1143, 0.2
      %v1163 = vmul.f32 %v1145, 0.2
      %v1164 = vmul.f32 %v1148, 0.2
      %v1165 = vmul.f32 %v1150, 0.2
      %v1166 = vmul.f32 %v1153, 0.2
      %v1167 = vmul.f32 %v1155, 0.2
      %v1168 = vmul.f32 %v1158, 0.2
      %v1169 = vmul.f32 %v1160, 0.2
      %v1170 = vmax.f32 %v1143, %v1162
      %v1171 = vmax.f32 %v1145, %v1163
      %v1172 = vmax.f32 %v1148, %v1164
      %v1173 = vmax.f32 %v1150, %v1165
      %v1174 = vmax.f32 %v1153, %v1166
      %v1175 = vmax.f32 %v1155, %v1167
      %v1176 = vmax.f32 %v1158, %v1168
      %v1177 = vmax.f32 %v1160, %v1169
      %vm1178 = vcmask 523264
      %v1179 = vsel %vm1178, %v1170, 0.0
      %1180 = vadd.xlane.f32.xlu0 %v1179
      %v1181 = vpop.xlane.xlu0 %1180
      %v1182 = vsel %vm1178, %v1171, 0.0
      %1183 = vadd.xlane.f32.xlu0 %v1182
      %v1184 = vpop.xlane.xlu0 %1183
      %v1185 = vsel %vm1178, %v1172, 0.0
      %1186 = vadd.xlane.f32.xlu0 %v1185
      %v1187 = vpop.xlane.xlu0 %1186
      %v1188 = vsel %vm1178, %v1173, 0.0
      %1189 = vadd.xlane.f32.xlu0 %v1188
      %v1190 = vpop.xlane.xlu0 %1189
      %v1191 = vsel %vm1178, %v1174, 0.0
      %1192 = vadd.xlane.f32.xlu0 %v1191
      %v1193 = vpop.xlane.xlu0 %1192
      %v1194 = vsel %vm1178, %v1175, 0.0
      %1195 = vadd.xlane.f32.xlu0 %v1194
      %v1196 = vpop.xlane.xlu0 %1195
      %v1197 = vsel %vm1178, %v1176, 0.0
      %1198 = vadd.xlane.f32.xlu0 %v1197
      %v1199 = vpop.xlane.xlu0 %1198
      %v1200 = vsel %vm1178, %v1177, 0.0
      %1201 = vadd.xlane.f32.xlu0 %v1200
      %v1202 = vpop.xlane.xlu0 %1201
      %v1203 = vmul.f32 %v1181, 0.015625
      %v1204 = vmul.f32 %v1184, 0.015625
      %v1205 = vmul.f32 %v1187, 0.015625
      %v1206 = vmul.f32 %v1190, 0.015625
      %v1207 = vmul.f32 %v1193, 0.015625
      %v1208 = vmul.f32 %v1196, 0.015625
      %v1209 = vmul.f32 %v1199, 0.015625
      %v1210 = vmul.f32 %v1202, 0.015625
      %v1211 = vmul.f32 %v1170, %v1170
      %v1212 = vmul.f32 %v1171, %v1171
      %v1213 = vmul.f32 %v1172, %v1172
      %v1214 = vmul.f32 %v1173, %v1173
      %v1215 = vmul.f32 %v1174, %v1174
      %v1216 = vmul.f32 %v1175, %v1175
      %v1217 = vmul.f32 %v1176, %v1176
      %v1218 = vmul.f32 %v1177, %v1177
      %v1219 = vsel %vm1178, %v1211, 0.0
      %1220 = vadd.xlane.f32.xlu0 %v1219
      %v1221 = vpop.xlane.xlu0 %1220
      %v1222 = vsel %vm1178, %v1212, 0.0
      %1223 = vadd.xlane.f32.xlu0 %v1222
      %v1224 = vpop.xlane.xlu0 %1223
      %v1225 = vsel %vm1178, %v1213, 0.0
      %1226 = vadd.xlane.f32.xlu0 %v1225
      %v1227 = vpop.xlane.xlu0 %1226
      %v1228 = vsel %vm1178, %v1214, 0.0
      %1229 = vadd.xlane.f32.xlu0 %v1228
      %v1230 = vpop.xlane.xlu0 %1229
      %v1231 = vsel %vm1178, %v1215, 0.0
      %1232 = vadd.xlane.f32.xlu0 %v1231
      %v1233 = vpop.xlane.xlu0 %1232
      %v1234 = vsel %vm1178, %v1216, 0.0
      %1235 = vadd.xlane.f32.xlu0 %v1234
      %v1236 = vpop.xlane.xlu0 %1235
      %v1237 = vsel %vm1178, %v1217, 0.0
      %1238 = vadd.xlane.f32.xlu0 %v1237
      %v1239 = vpop.xlane.xlu0 %1238
      %v1240 = vsel %vm1178, %v1218, 0.0
      %1241 = vadd.xlane.f32.xlu0 %v1240
      %v1242 = vpop.xlane.xlu0 %1241
      %v1243 = vmul.f32 %v1221, 0.015625
      %v1244 = vmul.f32 %v1224, 0.015625
      %v1245 = vmul.f32 %v1227, 0.015625
      %v1246 = vmul.f32 %v1230, 0.015625
      %v1247 = vmul.f32 %v1233, 0.015625
      %v1248 = vmul.f32 %v1236, 0.015625
      %v1249 = vmul.f32 %v1239, 0.015625
      %v1250 = vmul.f32 %v1242, 0.015625
      %v1251 = vmul.f32 %v1203, %v1203
      %v1252 = vmul.f32 %v1204, %v1204
      %v1253 = vmul.f32 %v1205, %v1205
      %v1254 = vmul.f32 %v1206, %v1206
      %v1255 = vmul.f32 %v1207, %v1207
      %v1256 = vmul.f32 %v1208, %v1208
      %v1257 = vmul.f32 %v1209, %v1209
      %v1258 = vmul.f32 %v1210, %v1210
      %v1259 = vsub.f32 %v1243, %v1251
      %v1260 = vsub.f32 %v1244, %v1252
      %v1261 = vsub.f32 %v1245, %v1253
      %v1262 = vsub.f32 %v1246, %v1254
      %v1263 = vsub.f32 %v1247, %v1255
      %v1264 = vsub.f32 %v1248, %v1256
      %v1265 = vsub.f32 %v1249, %v1257
      %v1266 = vsub.f32 %v1250, %v1258
      %v1267 = vsub.f32 %v1170, %v1203
      %v1268 = vsub.f32 %v1171, %v1204
      %v1269 = vsub.f32 %v1172, %v1205
      %v1270 = vsub.f32 %v1173, %v1206
      %v1271 = vsub.f32 %v1174, %v1207
      %v1272 = vsub.f32 %v1175, %v1208
      %v1273 = vsub.f32 %v1176, %v1209
      %v1274 = vsub.f32 %v1177, %v1210
      %v1275 = vadd.f32 %v1259, 1e-05
      %v1276 = vadd.f32 %v1260, 1e-05
      %v1277 = vadd.f32 %v1261, 1e-05
      %v1278 = vadd.f32 %v1262, 1e-05
      %v1279 = vadd.f32 %v1263, 1e-05
      %v1280 = vadd.f32 %v1264, 1e-05
      %v1281 = vadd.f32 %v1265, 1e-05
      %v1282 = vadd.f32 %v1266, 1e-05
      %v1283 = vrsqrt.pop %v1275
      %v1284 = vmul.f32 %v1283, %v1275
      %v1285 = vmul.f32 %v1284, %v1283
      %v1286 = vmul.f32 0.5, %v1285
      %v1287 = vsub.f32 1.5, %v1286
      %v1288 = vmul.f32 %v1283, %v1287
      %vm1289 = vweird.f32 %v1275
      %vm1290 = vweird.f32 %v1283
      %vm1291 = vmor %vm1289, %vm1290
      %v1292 = vsel %vm1291, %v1283, %v1288
      %v1293 = vrsqrt.pop %v1276
      %v1294 = vmul.f32 %v1293, %v1276
      %v1295 = vmul.f32 %v1294, %v1293
      %v1296 = vmul.f32 0.5, %v1295
      %v1297 = vsub.f32 1.5, %v1296
      %v1298 = vmul.f32 %v1293, %v1297
      %vm1299 = vweird.f32 %v1276
      %vm1300 = vweird.f32 %v1293
      %vm1301 = vmor %vm1299, %vm1300
      %v1302 = vsel %vm1301, %v1293, %v1298
      %v1303 = vrsqrt.pop %v1277
      %v1304 = vmul.f32 %v1303, %v1277
      %v1305 = vmul.f32 %v1304, %v1303
      %v1306 = vmul.f32 0.5, %v1305
      %v1307 = vsub.f32 1.5, %v1306
      %v1308 = vmul.f32 %v1303, %v1307
      %vm1309 = vweird.f32 %v1277
      %vm1310 = vweird.f32 %v1303
      %vm1311 = vmor %vm1309, %vm1310
      %v1312 = vsel %vm1311, %v1303, %v1308
      %v1313 = vrsqrt.pop %v1278
      %v1314 = vmul.f32 %v1313, %v1278
      %v1315 = vmul.f32 %v1314, %v1313
      %v1316 = vmul.f32 0.5, %v1315
      %v1317 = vsub.f32 1.5, %v1316
      %v1318 = vmul.f32 %v1313, %v1317
      %vm1319 = vweird.f32 %v1278
      %vm1320 = vweird.f32 %v1313
      %vm1321 = vmor %vm1319, %vm1320
      %v1322 = vsel %vm1321, %v1313, %v1318
      %v1323 = vrsqrt.pop %v1279
      %v1324 = vmul.f32 %v1323, %v1279
      %v1325 = vmul.f32 %v1324, %v1323
      %v1326 = vmul.f32 0.5, %v1325
      %v1327 = vsub.f32 1.5, %v1326
      %v1328 = vmul.f32 %v1323, %v1327
      %vm1329 = vweird.f32 %v1279
      %vm1330 = vweird.f32 %v1323
      %vm1331 = vmor %vm1329, %vm1330
      %v1332 = vsel %vm1331, %v1323, %v1328
      %v1333 = vrsqrt.pop %v1280
      %v1334 = vmul.f32 %v1333, %v1280
      %v1335 = vmul.f32 %v1334, %v1333
      %v1336 = vmul.f32 0.5, %v1335
      %v1337 = vsub.f32 1.5, %v1336
      %v1338 = vmul.f32 %v1333, %v1337
      %vm1339 = vweird.f32 %v1280
      %vm1340 = vweird.f32 %v1333
      %vm1341 = vmor %vm1339, %vm1340
      %v1342 = vsel %vm1341, %v1333, %v1338
      %v1343 = vrsqrt.pop %v1281
      %v1344 = vmul.f32 %v1343, %v1281
      %v1345 = vmul.f32 %v1344, %v1343
      %v1346 = vmul.f32 0.5, %v1345
      %v1347 = vsub.f32 1.5, %v1346
      %v1348 = vmul.f32 %v1343, %v1347
      %vm1349 = vweird.f32 %v1281
      %vm1350 = vweird.f32 %v1343
      %vm1351 = vmor %vm1349, %vm1350
      %v1352 = vsel %vm1351, %v1343, %v1348
      %v1353 = vrsqrt.pop %v1282
      %v1354 = vmul.f32 %v1353, %v1282
      %v1355 = vmul.f32 %v1354, %v1353
      %v1356 = vmul.f32 0.5, %v1355
      %v1357 = vsub.f32 1.5, %v1356
      %v1358 = vmul.f32 %v1353, %v1357
      %vm1359 = vweird.f32 %v1282
      %vm1360 = vweird.f32 %v1353
      %vm1361 = vmor %vm1359, %vm1360
      %v1362 = vsel %vm1361, %v1353, %v1358
      %v1363 = vmul.f32 %v1267, %v1292
      %v1364 = vmul.f32 %v1268, %v1302
      %v1365 = vmul.f32 %v1269, %v1312
      %v1366 = vmul.f32 %v1270, %v1322
      %v1367 = vmul.f32 %v1271, %v1332
      %v1368 = vmul.f32 %v1272, %v1342
      %v1369 = vmul.f32 %v1273, %v1352
      %v1370 = vmul.f32 %v1274, %v1362
      %v1371 = vld [vmem:[%s2 + $0x3] sm:$0x1]
      %v1372 = vpack.c.bf16 %v1364, %v1363
      %v1373 = vpack.c.bf16 %v1366, %v1365
      %v1374 = vpack.c.bf16 %v1368, %v1367
      %v1375 = vpack.c.bf16 %v1370, %v1369
      %v1376 = vld [vmem:[%s5] sm:$0xf]
      %v1377 = vld [vmem:[%s5 + $0x4] sm:$0xf]
      %v1378 = vld [vmem:[%s5 + $0x8] sm:$0xf]
      %v1379 = vld [vmem:[%s5 + $0xc] sm:$0xf]
      %v1380 = vld [vmem:[%s5 + $0x10] sm:$0xf]
      %v1381 = vld [vmem:[%s5 + $0x14] sm:$0xf]
      %v1382 = vld [vmem:[%s5 + $0x18] sm:$0xf]
      %v1383 = vld [vmem:[%s5 + $0x1c] sm:$0xf]
      %v1384 = vperm.slane %v1371, 0
      %v1393 = vunpack.c.l.b16 %v1376
      %v1394 = vunpack.c.l.b16 %v1377
      %v1395 = vunpack.c.l.b16 %v1378
      %v1396 = vunpack.c.l.b16 %v1379
      %v1397 = vunpack.c.l.b16 %v1380
      %v1398 = vunpack.c.l.b16 %v1381
      %v1399 = vunpack.c.l.b16 %v1382
      %v1400 = vunpack.c.l.b16 %v1383
      %v1401 = vpack.c.b16 %v1394, %v1393
      %v1402 = vpack.c.b16 %v1396, %v1395
      %v1403 = vpack.c.b16 %v1398, %v1397
      %v1404 = vpack.c.b16 %v1400, %v1399
      %v1410 = vsel %vm1178, %v1372, 0
      %v1413 = vsel %vm1178, %v1373, 0
      %v1416 = vsel %vm1178, %v1374, 0
      %v1419 = vsel %vm1178, %v1375, 0
      %1421 = vmatpush.bf16.msra.mxu0 0
      %1422 = vmatpush.bf16.msra.mxu0 0
      %1423 = vmatpush.bf16.msra.mxu0 0
      %1424 = vmatpush.bf16.msra.mxu0 0
      %1425 = vmatpush.bf16.msra.mxu0 %v1404
      %1426 = vmatpush.bf16.msra.mxu0 %v1403
      %1427 = vmatpush.bf16.msra.mxu0 %v1402
      %1428 = vmatpush.bf16.msra.mxu0 %v1401
      %1429 = vmatmul.bf16.gmra.mxu0 %v1410
      %v1430 = vpop.f32.mrf.mxu0
      %v1431 = vadd.f32 %v1384, %v1430
      %v1432 = vpop.f32.mrf.mxu0
      %v1433 = vadd.f32 %v1384, %v1432
      %1434 = vmatmul.bf16.gmra.mxu0 %v1413
      %v1435 = vpop.f32.mrf.mxu0
      %v1436 = vadd.f32 %v1384, %v1435
      %v1437 = vpop.f32.mrf.mxu0
      %v1438 = vadd.f32 %v1384, %v1437
      %1439 = vmatmul.bf16.gmra.mxu0 %v1416
      %v1440 = vpop.f32.mrf.mxu0
      %v1441 = vadd.f32 %v1384, %v1440
      %v1442 = vpop.f32.mrf.mxu0
      %v1443 = vadd.f32 %v1384, %v1442
      %1444 = vmatmul.bf16.gmra.mxu0 %v1419
      %v1445 = vpop.f32.mrf.mxu0
      %v1446 = vadd.f32 %v1384, %v1445
      %v1447 = vpop.f32.mrf.mxu0
      %v1448 = vadd.f32 %v1384, %v1447
      %1449 = vdwg.mxu0
      %1450 = vmax.xlane.f32.xlu0 %v1431
      %v1451 = vpop.xlane.xlu0 %1450
      %1452 = vmax.xlane.f32.xlu0 %v1433
      %v1453 = vpop.xlane.xlu0 %1452
      %1454 = vmax.xlane.f32.xlu0 %v1436
      %v1455 = vpop.xlane.xlu0 %1454
      %1456 = vmax.xlane.f32.xlu0 %v1438
      %v1457 = vpop.xlane.xlu0 %1456
      %1458 = vmax.xlane.f32.xlu0 %v1441
      %v1459 = vpop.xlane.xlu0 %1458
      %1460 = vmax.xlane.f32.xlu0 %v1443
      %v1461 = vpop.xlane.xlu0 %1460
      %1462 = vmax.xlane.f32.xlu0 %v1446
      %v1463 = vpop.xlane.xlu0 %1462
      %1464 = vmax.xlane.f32.xlu0 %v1448
      %v1465 = vpop.xlane.xlu0 %1464
      %v1466 = vsub.f32 %v1431, %v1451
      %v1467 = vsub.f32 %v1433, %v1453
      %v1468 = vsub.f32 %v1436, %v1455
      %v1469 = vsub.f32 %v1438, %v1457
      %v1470 = vsub.f32 %v1441, %v1459
      %v1471 = vsub.f32 %v1443, %v1461
      %v1472 = vsub.f32 %v1446, %v1463
      %v1473 = vsub.f32 %v1448, %v1465
      %v1474 = vmul.f32 %v1466, 1.442695
      %v1475 = vpow.pop %v1474
      %v1476 = vmul.f32 %v1467, 1.442695
      %v1477 = vpow.pop %v1476
      %v1478 = vmul.f32 %v1468, 1.442695
      %v1479 = vpow.pop %v1478
      %v1480 = vmul.f32 %v1469, 1.442695
      %v1481 = vpow.pop %v1480
      %v1482 = vmul.f32 %v1470, 1.442695
      %v1483 = vpow.pop %v1482
      %v1484 = vmul.f32 %v1471, 1.442695
      %v1485 = vpow.pop %v1484
      %v1486 = vmul.f32 %v1472, 1.442695
      %v1487 = vpow.pop %v1486
      %v1488 = vmul.f32 %v1473, 1.442695
      %v1489 = vpow.pop %v1488
      %1490 = vadd.xlane.f32.xlu0 %v1475
      %v1491 = vpop.xlane.xlu0 %1490
      %1492 = vadd.xlane.f32.xlu0 %v1477
      %v1493 = vpop.xlane.xlu0 %1492
      %1494 = vadd.xlane.f32.xlu0 %v1479
      %v1495 = vpop.xlane.xlu0 %1494
      %1496 = vadd.xlane.f32.xlu0 %v1481
      %v1497 = vpop.xlane.xlu0 %1496
      %1498 = vadd.xlane.f32.xlu0 %v1483
      %v1499 = vpop.xlane.xlu0 %1498
      %1500 = vadd.xlane.f32.xlu0 %v1485
      %v1501 = vpop.xlane.xlu0 %1500
      %1502 = vadd.xlane.f32.xlu0 %v1487
      %v1503 = vpop.xlane.xlu0 %1502
      %1504 = vadd.xlane.f32.xlu0 %v1489
      %v1505 = vpop.xlane.xlu0 %1504
      %v1506 = vrcp.pop %v1491
      %v1507 = vrcp.pop %v1493
      %v1508 = vrcp.pop %v1495
      %v1509 = vrcp.pop %v1497
      %v1510 = vrcp.pop %v1499
      %v1511 = vrcp.pop %v1501
      %v1512 = vrcp.pop %v1503
      %v1513 = vrcp.pop %v1505
      %v1514 = vmul.f32 %v1475, %v1506
      %v1515 = vmul.f32 %v1477, %v1507
      %v1516 = vmul.f32 %v1479, %v1508
      %v1517 = vmul.f32 %v1481, %v1509
      %v1518 = vmul.f32 %v1483, %v1510
      %v1519 = vmul.f32 %v1485, %v1511
      %v1520 = vmul.f32 %v1487, %v1512
      %v1521 = vmul.f32 %v1489, %v1513
      %vm1522 = vcmask 31744
      %1523 = vst.msk [vmem:[%s273] sm:$0xff] %vm1522, %v1514
      %1524 = vst.msk [vmem:[%s273 + $0x8] sm:$0xff] %vm1522, %v1515
      %1525 = vst.msk [vmem:[%s273 + $0x10] sm:$0xff] %vm1522, %v1516
      %1526 = vst.msk [vmem:[%s273 + $0x18] sm:$0xff] %vm1522, %v1517
      %1527 = vst.msk [vmem:[%s273 + $0x20] sm:$0xff] %vm1522, %v1518
      %1528 = vst.msk [vmem:[%s273 + $0x28] sm:$0xff] %vm1522, %v1519
      %1529 = vst.msk [vmem:[%s273 + $0x30] sm:$0xff] %vm1522, %v1520
      %1530 = vst.msk [vmem:[%s273 + $0x38] sm:$0xff] %vm1522, %v1521
      %s1531 = smul.u32 8, %s17
      %p1532 = scmp.lt.s32.totalorder %s1531, 31
      %s1533 = scalar_select %p1532, %s1531, 31
      %s1534 = smul.addr %s1533, 8
      %s1535 = scalar_lea.vmem %s6, %s1534
      // Predicated region
      $region45: #{classifier_forward.1} parent=43 // pred_check
        %p1536 = pneg %p166
      $region46: #{classifier_forward.1} parent=43 // pred_check_branch
        %1538 = sbr.rel (%p1536) target = $region48
      $region47: #{classifier_forward.1} parent=43 // pred_region
        %s1539 = smul.u32 8, %s17
      $region48: #{classifier_forward.1} parent=43 // pred_fallthru
        _
    $region44: #{classifier_forward.1} parent=5 // pred_fallthru
      _
    %p1540 = scmp.le.s32.totalorder 2, %s12
    // Predicated region
    $region49: #{classifier_forward.1} parent=5 // pred_check
      %p1541 = pneg %p1540
    $region50: #{classifier_forward.1} parent=5 // pred_check_branch
      %1543 = sbr.rel (%p1541) target = $region52
    $region51: #{classifier_forward.1} parent=5 // pred_region
      %s1544 = ssub.s32 %s12, 2
      // Predicated region
      $region53: #{classifier_forward.1} parent=51 // pred_check
        %p1545 = pneg %p172
      $region54: #{classifier_forward.1} parent=51 // pred_check_branch
        %1547 = sbr.rel (%p1545) target = $region56
      $region55: #{classifier_forward.1} parent=51 // pred_region
        %s1548 = smul.u32 8, %s18
        %p1549 = scmp.lt.s32.totalorder %s1548, 31
        %s1550 = scalar_select %p1549, %s1548, 31
        %s1551 = smul.addr %s1550, 8
        %s1552 = scalar_lea.vmem %s6, %s1551
      $region56: #{classifier_forward.1} parent=51 // pred_fallthru
        _
    $region52: #{classifier_forward.1} parent=5 // pred_fallthru
      _
  $region6: #{classifier_forward.1} parent=0 // loop_footer
    %s16 = sadd.s32 1, %s12
  $region7: #{classifier_forward.1} parent=0 // loop_footer_branch
    %11 = sbr.rel target = $region3
  $region8: #{classifier_forward.1} parent=0 // loop_exit
    _

</llo_original>
